<compile_context>
chip_gen: v7x
topology: tpu7x:2x2x1
jax: 0.10.0
libtpu: 0.0.40
codegen_flags: <defaults>
</compile_context>

<pallas_src>
import functools

import jax
import jax.numpy as jnp
from jax.experimental import pallas as pl
from jax.experimental.pallas import tpu as pltpu


def _lstm_tagger_kernel(x_ref, wih_ref, whh_ref, b_ref, wout_ref, bout_ref,
                        out_ref, act_ref, *, seq_len, batch_p, hidden_dim):
    """Whole forward pass in one invocation.

    x_ref    : (T*Bp, E)   time-major, batch-padded inputs
    wih_ref  : (E, 4H)     W_ih^T
    whh_ref  : (H, 4H)     W_hh^T
    b_ref    : (1, 4H)     b_ih + b_hh
    wout_ref : (H, Kp)     W_out^T, zero-padded columns
    bout_ref : (1, Kp)     b_out, padded columns = -1e30
    out_ref  : (T*Bp, Kp)  log-softmax scores (lane-dense full-tile store)
    act_ref  : (T*Bp, H)   VMEM scratch for per-step ReLU(h)
    """
    T, Bp, H = seq_len, batch_p, hidden_dim

    # (1) Batched input projection for all timesteps: one MXU-friendly matmul.
    gx = (jnp.dot(x_ref[...], wih_ref[...], preferred_element_type=jnp.float32)
          + b_ref[...])                                    # (T*Bp, 4H)

    # Hoist the recurrent weight load out of the serial loop.
    whh = whh_ref[...]                                     # (H, 4H)

    # (2) Serial LSTM recurrence, fully unrolled (T is small and static).
    #     Only one small matmul per step remains on the serial critical path;
    #     all slices are static and sublane/lane aligned.
    h = jnp.zeros((Bp, H), jnp.float32)
    c = jnp.zeros((Bp, H), jnp.float32)
    for t in range(T):
        g = (jnp.dot(h, whh, preferred_element_type=jnp.float32)
             + gx[t * Bp:(t + 1) * Bp, :])                 # (Bp, 4H)
        # PyTorch gate order: i, f, g, o  (static lane slices of one vreg)
        i_g = jax.nn.sigmoid(g[:, 0 * H:1 * H])
        f_g = jax.nn.sigmoid(g[:, 1 * H:2 * H])
        g_g = jnp.tanh(g[:, 2 * H:3 * H])
        o_g = jax.nn.sigmoid(g[:, 3 * H:4 * H])
        c = f_g * c + i_g * g_g
        h = o_g * jnp.tanh(c)
        # ReLU; dropout = identity in eval mode.  Static sublane-aligned store.
        act_ref[t * Bp:(t + 1) * Bp, :] = jnp.maximum(h, 0.0)

    # (3) Hoisted hidden2tag Linear + log_softmax for all timesteps at once.
    #     Padded tag columns carry a -1e30 bias -> exp underflows to 0, so the
    #     log-sum-exp over Kp lanes equals the log-sum-exp over the real K.
    tag = (jnp.dot(act_ref[...], wout_ref[...],
                   preferred_element_type=jnp.float32)
           + bout_ref[...])                                # (T*Bp, Kp)
    m = jnp.max(tag, axis=-1, keepdims=True)
    lse = m + jnp.log(jnp.sum(jnp.exp(tag - m), axis=-1, keepdims=True))
    out_ref[...] = (tag - lse).astype(out_ref.dtype)       # full-tile store


@jax.jit
def lstm_tagger_forward(x, w_ih, w_hh, b_ih, b_hh, w_out, b_out):
    """x: (B, T, E) float32 (batch_first). Weights in PyTorch shapes:
       w_ih:(4H,E) w_hh:(4H,H) b_ih:(4H,) b_hh:(4H,) w_out:(K,H) b_out:(K,).
       Returns (B, T, K) log-softmax tag scores."""
    B, T, E = x.shape
    H = w_hh.shape[1]
    K = w_out.shape[0]

    Bp = ((B + 7) // 8) * 8          # pad batch to f32 sublane count
    Kp = ((K + 127) // 128) * 128    # pad tag dim to full 128-lane width

    # Batch-pad, go time-major, flatten to (T*Bp, E). Row index = t*Bp + b.
    x_p = jnp.pad(x.astype(jnp.float32), ((0, Bp - B), (0, 0), (0, 0)))
    x2d = jnp.transpose(x_p, (1, 0, 2)).reshape(T * Bp, E)

    # Pre-transpose weights so the kernel does plain (N,·)@(·,·) matmuls.
    wih_t = jnp.transpose(w_ih).astype(jnp.float32)        # (E, 4H)
    whh_t = jnp.transpose(w_hh).astype(jnp.float32)        # (H, 4H)
    b_all = (b_ih + b_hh).astype(jnp.float32).reshape(1, 4 * H)   # (1, 4H)
    # Zero weight columns + -1e30 bias for the padded tag lanes.
    wout_p = jnp.pad(jnp.transpose(w_out).astype(jnp.float32),
                     ((0, 0), (0, Kp - K)))                        # (H, Kp)
    bout_p = jnp.pad(b_out.astype(jnp.float32), (0, Kp - K),
                     constant_values=-1e30).reshape(1, Kp)         # (1, Kp)

    kernel = functools.partial(_lstm_tagger_kernel,
                               seq_len=T, batch_p=Bp, hidden_dim=H)

    out2d = pl.pallas_call(
        kernel,
        out_shape=jax.ShapeDtypeStruct((T * Bp, Kp), jnp.float32),
        grid=(1,),                                      # single invocation
        in_specs=[
            pl.BlockSpec((T * Bp, E), lambda i: (0, 0)),     # x (time-major)
            pl.BlockSpec((E, 4 * H), lambda i: (0, 0)),      # W_ih^T
            pl.BlockSpec((H, 4 * H), lambda i: (0, 0)),      # W_hh^T
            pl.BlockSpec((1, 4 * H), lambda i: (0, 0)),      # bias
            pl.BlockSpec((H, Kp), lambda i: (0, 0)),         # W_out^T (padded)
            pl.BlockSpec((1, Kp), lambda i: (0, 0)),         # b_out   (padded)
        ],
        out_specs=pl.BlockSpec((T * Bp, Kp), lambda i: (0, 0)),
        scratch_shapes=[pltpu.VMEM((T * Bp, H), jnp.float32)],  # ReLU(h) acts
        compiler_params=pltpu.CompilerParams(
            dimension_semantics=("arbitrary",)),
    )(x2d, wih_t, whh_t, b_all, wout_p, bout_p)

    # Drop batch/tag padding and return batch-first (B, T, K).
    out = out2d.reshape(T, Bp, Kp)[:, :B, :K]
    return jnp.transpose(out, (1, 0, 2))


def _reference_forward(x, w_ih, w_hh, b_ih, b_hh, w_out, b_out):
    """Pure-JAX reference mirroring torch semantics (eval mode)."""
    B, T, E = x.shape
    H = w_hh.shape[1]

    def step(carry, x_t):
        h, c = carry
        gates = x_t @ w_ih.T + h @ w_hh.T + b_ih + b_hh
        i = jax.nn.sigmoid(gates[:, 0 * H:1 * H])
        f = jax.nn.sigmoid(gates[:, 1 * H:2 * H])
        g = jnp.tanh(gates[:, 2 * H:3 * H])
        o = jax.nn.sigmoid(gates[:, 3 * H:4 * H])
        c = f * c + i * g
        h = o * jnp.tanh(c)
        return (h, c), h

    init = (jnp.zeros((B, H), jnp.float32), jnp.zeros((B, H), jnp.float32))
    _, hs = jax.lax.scan(step, init, jnp.transpose(x, (1, 0, 2)))
    hs = jnp.transpose(hs, (1, 0, 2))              # (B, T, H)
    act = jnp.maximum(hs, 0.0)                     # ReLU; dropout = identity
    tag = act @ w_out.T + b_out
    return jax.nn.log_softmax(tag, axis=2)


if __name__ == "__main__":
    # Small shapes consistent with the module's forward.
    B, T, E, H, K = 2, 8, 16, 32, 8          # batch, seq, embed, hidden, tagset

    key = jax.random.PRNGKey(0)
    keys = jax.random.split(key, 7)
    bound = 1.0 / jnp.sqrt(jnp.float32(H))   # PyTorch-style uniform init

    w_ih = jax.random.uniform(keys[0], (4 * H, E), jnp.float32, -bound, bound)
    w_hh = jax.random.uniform(keys[1], (4 * H, H), jnp.float32, -bound, bound)
    b_ih = jax.random.uniform(keys[2], (4 * H,), jnp.float32, -bound, bound)
    b_hh = jax.random.uniform(keys[3], (4 * H,), jnp.float32, -bound, bound)
    w_out = jax.random.uniform(keys[4], (K, H), jnp.float32, -bound, bound)
    b_out = jax.random.uniform(keys[5], (K,), jnp.float32, -bound, bound)

    x = jax.random.normal(keys[6], (B, T, E), jnp.float32)

    out = lstm_tagger_forward(x, w_ih, w_hh, b_ih, b_hh, w_out, b_out)
    out = jax.block_until_ready(out)

    ref = _reference_forward(x, w_ih, w_hh, b_ih, b_hh, w_out, b_out)
    assert out.shape == (B, T, K)
    assert jnp.allclose(out, ref, atol=1e-5, rtol=1e-5)

    # TODO(synk): training-mode dropout (stochastic mask) not implemented;
    # forward matches PyTorch eval() semantics where Dropout is identity.
    print("KERNEL_OK")
</pallas_src>

<mosaic_0001>
module attributes {stable_mosaic.version = 11 : i64} {
  func.func @_lstm_tagger_kernel(%arg0: i32, %arg1: memref<64x16xf32, #tpu.memory_space<vmem>>, %arg2: memref<16x128xf32, #tpu.memory_space<vmem>>, %arg3: memref<32x128xf32, #tpu.memory_space<vmem>>, %arg4: memref<1x128xf32, #tpu.memory_space<vmem>>, %arg5: memref<32x128xf32, #tpu.memory_space<vmem>>, %arg6: memref<1x128xf32, #tpu.memory_space<vmem>>, %arg7: memref<64x128xf32, #tpu.memory_space<vmem>>, %arg8: memref<64x32xf32, #tpu.memory_space<vmem>>) attributes {dimension_semantics = [#tpu.dimension_semantics<arbitrary>], iteration_bounds = array<i64: 1>, scalar_prefetch = 0 : i64, scratch_operands = 1 : i64, tpu.core_type = #tpu.core_type<tc>, window_params = [{pipeline_mode = #tpu.pipeline_mode<synchronous>, transform_indices = @transform_0, window_bounds = array<i64: 64, 16>}, {pipeline_mode = #tpu.pipeline_mode<synchronous>, transform_indices = @transform_1, window_bounds = array<i64: 16, 128>}, {pipeline_mode = #tpu.pipeline_mode<synchronous>, transform_indices = @transform_2, window_bounds = array<i64: 32, 128>}, {pipeline_mode = #tpu.pipeline_mode<synchronous>, transform_indices = @transform_3, window_bounds = array<i64: 1, 128>}, {pipeline_mode = #tpu.pipeline_mode<synchronous>, transform_indices = @transform_4, window_bounds = array<i64: 32, 128>}, {pipeline_mode = #tpu.pipeline_mode<synchronous>, transform_indices = @transform_5, window_bounds = array<i64: 1, 128>}, {pipeline_mode = #tpu.pipeline_mode<synchronous>, transform_indices = @transform_6, window_bounds = array<i64: 64, 128>}]} {
    %c0 = arith.constant 0 : index
    %c0_0 = arith.constant 0 : index
    %0 = vector.load %arg1[%c0, %c0_0] : memref<64x16xf32, #tpu.memory_space<vmem>>, vector<64x16xf32>
    %c0_1 = arith.constant 0 : index
    %c0_2 = arith.constant 0 : index
    %1 = vector.load %arg2[%c0_1, %c0_2] : memref<16x128xf32, #tpu.memory_space<vmem>>, vector<16x128xf32>
    %cst = arith.constant dense<0.000000e+00> : vector<64x128xf32>
    %2 = tpu.matmul %0, %1, %cst {dimension_numbers = #tpu.dot_dimension_numbers<[1], [0], [0], [1], [0, 0, 1, 1], [], []>} : vector<64x16xf32>, vector<16x128xf32>, vector<64x128xf32> -> vector<64x128xf32>
    %c0_3 = arith.constant 0 : index
    %c0_4 = arith.constant 0 : index
    %3 = vector.load %arg4[%c0_3, %c0_4] : memref<1x128xf32, #tpu.memory_space<vmem>>, vector<1x128xf32>
    %4 = vector.broadcast %3 : vector<1x128xf32> to vector<64x128xf32>
    %5 = arith.addf %2, %4 : vector<64x128xf32>
    %c0_5 = arith.constant 0 : index
    %c0_6 = arith.constant 0 : index
    %6 = vector.load %arg3[%c0_5, %c0_6] : memref<32x128xf32, #tpu.memory_space<vmem>>, vector<32x128xf32>
    %cst_7 = arith.constant 0.000000e+00 : f32
    %7 = vector.broadcast %cst_7 : f32 to vector<8x32xf32>
    %cst_8 = arith.constant 0.000000e+00 : f32
    %8 = vector.broadcast %cst_8 : f32 to vector<8x32xf32>
    %cst_9 = arith.constant dense<0.000000e+00> : vector<8x128xf32>
    %9 = tpu.matmul %7, %6, %cst_9 {dimension_numbers = #tpu.dot_dimension_numbers<[1], [0], [0], [1], [0, 0, 1, 1], [], []>} : vector<8x32xf32>, vector<32x128xf32>, vector<8x128xf32> -> vector<8x128xf32>
    %10 = vector.extract_strided_slice %5 {offsets = [0, 0], sizes = [8, 128], strides = [1, 1]} : vector<64x128xf32> to vector<8x128xf32>
    %11 = arith.addf %9, %10 : vector<8x128xf32>
    %12 = vector.extract_strided_slice %11 {offsets = [0, 0], sizes = [8, 32], strides = [1, 1]} : vector<8x128xf32> to vector<8x32xf32>
    %13 = arith.negf %12 : vector<8x32xf32>
    %14 = math.exp %13 : vector<8x32xf32>
    %cst_10 = arith.constant 1.000000e+00 : f32
    %15 = vector.broadcast %cst_10 : f32 to vector<8x32xf32>
    %16 = arith.addf %15, %14 : vector<8x32xf32>
    %17 = arith.divf %15, %16 : vector<8x32xf32>
    %18 = vector.extract_strided_slice %11 {offsets = [0, 32], sizes = [8, 32], strides = [1, 1]} : vector<8x128xf32> to vector<8x32xf32>
    %19 = arith.negf %18 : vector<8x32xf32>
    %20 = math.exp %19 : vector<8x32xf32>
    %cst_11 = arith.constant 1.000000e+00 : f32
    %21 = vector.broadcast %cst_11 : f32 to vector<8x32xf32>
    %22 = arith.addf %21, %20 : vector<8x32xf32>
    %23 = arith.divf %21, %22 : vector<8x32xf32>
    %24 = vector.extract_strided_slice %11 {offsets = [0, 64], sizes = [8, 32], strides = [1, 1]} : vector<8x128xf32> to vector<8x32xf32>
    %25 = math.tanh %24 : vector<8x32xf32>
    %26 = vector.extract_strided_slice %11 {offsets = [0, 96], sizes = [8, 32], strides = [1, 1]} : vector<8x128xf32> to vector<8x32xf32>
    %27 = arith.negf %26 : vector<8x32xf32>
    %28 = math.exp %27 : vector<8x32xf32>
    %cst_12 = arith.constant 1.000000e+00 : f32
    %29 = vector.broadcast %cst_12 : f32 to vector<8x32xf32>
    %30 = arith.addf %29, %28 : vector<8x32xf32>
    %31 = arith.divf %29, %30 : vector<8x32xf32>
    %32 = arith.mulf %23, %8 : vector<8x32xf32>
    %33 = arith.mulf %17, %25 : vector<8x32xf32>
    %34 = arith.addf %32, %33 : vector<8x32xf32>
    %35 = math.tanh %34 : vector<8x32xf32>
    %36 = arith.mulf %31, %35 : vector<8x32xf32>
    %cst_13 = arith.constant 0.000000e+00 : f32
    %37 = vector.broadcast %cst_13 : f32 to vector<8x32xf32>
    %38 = arith.maximumf %36, %37 : vector<8x32xf32>
    %c0_14 = arith.constant 0 : index
    %c0_15 = arith.constant 0 : index
    %39 = vector.load %arg8[%c0_14, %c0_15] : memref<64x32xf32, #tpu.memory_space<vmem>>, vector<8x32xf32>
    tpu.vector_store %arg8[%c0_14, %c0_15], %38 {strides = array<i32>} : memref<64x32xf32, #tpu.memory_space<vmem>>, vector<8x32xf32>,
    %cst_16 = arith.constant dense<0.000000e+00> : vector<8x128xf32>
    %40 = tpu.matmul %36, %6, %cst_16 {dimension_numbers = #tpu.dot_dimension_numbers<[1], [0], [0], [1], [0, 0, 1, 1], [], []>} : vector<8x32xf32>, vector<32x128xf32>, vector<8x128xf32> -> vector<8x128xf32>
    %41 = vector.extract_strided_slice %5 {offsets = [8, 0], sizes = [8, 128], strides = [1, 1]} : vector<64x128xf32> to vector<8x128xf32>
    %42 = arith.addf %40, %41 : vector<8x128xf32>
    %43 = vector.extract_strided_slice %42 {offsets = [0, 0], sizes = [8, 32], strides = [1, 1]} : vector<8x128xf32> to vector<8x32xf32>
    %44 = arith.negf %43 : vector<8x32xf32>
    %45 = math.exp %44 : vector<8x32xf32>
    %cst_17 = arith.constant 1.000000e+00 : f32
    %46 = vector.broadcast %cst_17 : f32 to vector<8x32xf32>
    %47 = arith.addf %46, %45 : vector<8x32xf32>
    %48 = arith.divf %46, %47 : vector<8x32xf32>
    %49 = vector.extract_strided_slice %42 {offsets = [0, 32], sizes = [8, 32], strides = [1, 1]} : vector<8x128xf32> to vector<8x32xf32>
    %50 = arith.negf %49 : vector<8x32xf32>
    %51 = math.exp %50 : vector<8x32xf32>
    %cst_18 = arith.constant 1.000000e+00 : f32
    %52 = vector.broadcast %cst_18 : f32 to vector<8x32xf32>
    %53 = arith.addf %52, %51 : vector<8x32xf32>
    %54 = arith.divf %52, %53 : vector<8x32xf32>
    %55 = vector.extract_strided_slice %42 {offsets = [0, 64], sizes = [8, 32], strides = [1, 1]} : vector<8x128xf32> to vector<8x32xf32>
    %56 = math.tanh %55 : vector<8x32xf32>
    %57 = vector.extract_strided_slice %42 {offsets = [0, 96], sizes = [8, 32], strides = [1, 1]} : vector<8x128xf32> to vector<8x32xf32>
    %58 = arith.negf %57 : vector<8x32xf32>
    %59 = math.exp %58 : vector<8x32xf32>
    %cst_19 = arith.constant 1.000000e+00 : f32
    %60 = vector.broadcast %cst_19 : f32 to vector<8x32xf32>
    %61 = arith.addf %60, %59 : vector<8x32xf32>
    %62 = arith.divf %60, %61 : vector<8x32xf32>
    %63 = arith.mulf %54, %34 : vector<8x32xf32>
    %64 = arith.mulf %48, %56 : vector<8x32xf32>
    %65 = arith.addf %63, %64 : vector<8x32xf32>
    %66 = math.tanh %65 : vector<8x32xf32>
    %67 = arith.mulf %62, %66 : vector<8x32xf32>
    %cst_20 = arith.constant 0.000000e+00 : f32
    %68 = vector.broadcast %cst_20 : f32 to vector<8x32xf32>
    %69 = arith.maximumf %67, %68 : vector<8x32xf32>
    %c8 = arith.constant 8 : index
    %c0_21 = arith.constant 0 : index
    %70 = vector.load %arg8[%c8, %c0_21] : memref<64x32xf32, #tpu.memory_space<vmem>>, vector<8x32xf32>
    tpu.vector_store %arg8[%c8, %c0_21], %69 {strides = array<i32>} : memref<64x32xf32, #tpu.memory_space<vmem>>, vector<8x32xf32>,
    %cst_22 = arith.constant dense<0.000000e+00> : vector<8x128xf32>
    %71 = tpu.matmul %67, %6, %cst_22 {dimension_numbers = #tpu.dot_dimension_numbers<[1], [0], [0], [1], [0, 0, 1, 1], [], []>} : vector<8x32xf32>, vector<32x128xf32>, vector<8x128xf32> -> vector<8x128xf32>
    %72 = vector.extract_strided_slice %5 {offsets = [16, 0], sizes = [8, 128], strides = [1, 1]} : vector<64x128xf32> to vector<8x128xf32>
    %73 = arith.addf %71, %72 : vector<8x128xf32>
    %74 = vector.extract_strided_slice %73 {offsets = [0, 0], sizes = [8, 32], strides = [1, 1]} : vector<8x128xf32> to vector<8x32xf32>
    %75 = arith.negf %74 : vector<8x32xf32>
    %76 = math.exp %75 : vector<8x32xf32>
    %cst_23 = arith.constant 1.000000e+00 : f32
    %77 = vector.broadcast %cst_23 : f32 to vector<8x32xf32>
    %78 = arith.addf %77, %76 : vector<8x32xf32>
    %79 = arith.divf %77, %78 : vector<8x32xf32>
    %80 = vector.extract_strided_slice %73 {offsets = [0, 32], sizes = [8, 32], strides = [1, 1]} : vector<8x128xf32> to vector<8x32xf32>
    %81 = arith.negf %80 : vector<8x32xf32>
    %82 = math.exp %81 : vector<8x32xf32>
    %cst_24 = arith.constant 1.000000e+00 : f32
    %83 = vector.broadcast %cst_24 : f32 to vector<8x32xf32>
    %84 = arith.addf %83, %82 : vector<8x32xf32>
    %85 = arith.divf %83, %84 : vector<8x32xf32>
    %86 = vector.extract_strided_slice %73 {offsets = [0, 64], sizes = [8, 32], strides = [1, 1]} : vector<8x128xf32> to vector<8x32xf32>
    %87 = math.tanh %86 : vector<8x32xf32>
    %88 = vector.extract_strided_slice %73 {offsets = [0, 96], sizes = [8, 32], strides = [1, 1]} : vector<8x128xf32> to vector<8x32xf32>
    %89 = arith.negf %88 : vector<8x32xf32>
    %90 = math.exp %89 : vector<8x32xf32>
    %cst_25 = arith.constant 1.000000e+00 : f32
    %91 = vector.broadcast %cst_25 : f32 to vector<8x32xf32>
    %92 = arith.addf %91, %90 : vector<8x32xf32>
    %93 = arith.divf %91, %92 : vector<8x32xf32>
    %94 = arith.mulf %85, %65 : vector<8x32xf32>
    %95 = arith.mulf %79, %87 : vector<8x32xf32>
    %96 = arith.addf %94, %95 : vector<8x32xf32>
    %97 = math.tanh %96 : vector<8x32xf32>
    %98 = arith.mulf %93, %97 : vector<8x32xf32>
    %cst_26 = arith.constant 0.000000e+00 : f32
    %99 = vector.broadcast %cst_26 : f32 to vector<8x32xf32>
    %100 = arith.maximumf %98, %99 : vector<8x32xf32>
    %c16 = arith.constant 16 : index
    %c0_27 = arith.constant 0 : index
    %101 = vector.load %arg8[%c16, %c0_27] : memref<64x32xf32, #tpu.memory_space<vmem>>, vector<8x32xf32>
    tpu.vector_store %arg8[%c16, %c0_27], %100 {strides = array<i32>} : memref<64x32xf32, #tpu.memory_space<vmem>>, vector<8x32xf32>,
    %cst_28 = arith.constant dense<0.000000e+00> : vector<8x128xf32>
    %102 = tpu.matmul %98, %6, %cst_28 {dimension_numbers = #tpu.dot_dimension_numbers<[1], [0], [0], [1], [0, 0, 1, 1], [], []>} : vector<8x32xf32>, vector<32x128xf32>, vector<8x128xf32> -> vector<8x128xf32>
    %103 = vector.extract_strided_slice %5 {offsets = [24, 0], sizes = [8, 128], strides = [1, 1]} : vector<64x128xf32> to vector<8x128xf32>
    %104 = arith.addf %102, %103 : vector<8x128xf32>
    %105 = vector.extract_strided_slice %104 {offsets = [0, 0], sizes = [8, 32], strides = [1, 1]} : vector<8x128xf32> to vector<8x32xf32>
    %106 = arith.negf %105 : vector<8x32xf32>
    %107 = math.exp %106 : vector<8x32xf32>
    %cst_29 = arith.constant 1.000000e+00 : f32
    %108 = vector.broadcast %cst_29 : f32 to vector<8x32xf32>
    %109 = arith.addf %108, %107 : vector<8x32xf32>
    %110 = arith.divf %108, %109 : vector<8x32xf32>
    %111 = vector.extract_strided_slice %104 {offsets = [0, 32], sizes = [8, 32], strides = [1, 1]} : vector<8x128xf32> to vector<8x32xf32>
    %112 = arith.negf %111 : vector<8x32xf32>
    %113 = math.exp %112 : vector<8x32xf32>
    %cst_30 = arith.constant 1.000000e+00 : f32
    %114 = vector.broadcast %cst_30 : f32 to vector<8x32xf32>
    %115 = arith.addf %114, %113 : vector<8x32xf32>
    %116 = arith.divf %114, %115 : vector<8x32xf32>
    %117 = vector.extract_strided_slice %104 {offsets = [0, 64], sizes = [8, 32], strides = [1, 1]} : vector<8x128xf32> to vector<8x32xf32>
    %118 = math.tanh %117 : vector<8x32xf32>
    %119 = vector.extract_strided_slice %104 {offsets = [0, 96], sizes = [8, 32], strides = [1, 1]} : vector<8x128xf32> to vector<8x32xf32>
    %120 = arith.negf %119 : vector<8x32xf32>
    %121 = math.exp %120 : vector<8x32xf32>
    %cst_31 = arith.constant 1.000000e+00 : f32
    %122 = vector.broadcast %cst_31 : f32 to vector<8x32xf32>
    %123 = arith.addf %122, %121 : vector<8x32xf32>
    %124 = arith.divf %122, %123 : vector<8x32xf32>
    %125 = arith.mulf %116, %96 : vector<8x32xf32>
    %126 = arith.mulf %110, %118 : vector<8x32xf32>
    %127 = arith.addf %125, %126 : vector<8x32xf32>
    %128 = math.tanh %127 : vector<8x32xf32>
    %129 = arith.mulf %124, %128 : vector<8x32xf32>
    %cst_32 = arith.constant 0.000000e+00 : f32
    %130 = vector.broadcast %cst_32 : f32 to vector<8x32xf32>
    %131 = arith.maximumf %129, %130 : vector<8x32xf32>
    %c24 = arith.constant 24 : index
    %c0_33 = arith.constant 0 : index
    %132 = vector.load %arg8[%c24, %c0_33] : memref<64x32xf32, #tpu.memory_space<vmem>>, vector<8x32xf32>
    tpu.vector_store %arg8[%c24, %c0_33], %131 {strides = array<i32>} : memref<64x32xf32, #tpu.memory_space<vmem>>, vector<8x32xf32>,
    %cst_34 = arith.constant dense<0.000000e+00> : vector<8x128xf32>
    %133 = tpu.matmul %129, %6, %cst_34 {dimension_numbers = #tpu.dot_dimension_numbers<[1], [0], [0], [1], [0, 0, 1, 1], [], []>} : vector<8x32xf32>, vector<32x128xf32>, vector<8x128xf32> -> vector<8x128xf32>
    %134 = vector.extract_strided_slice %5 {offsets = [32, 0], sizes = [8, 128], strides = [1, 1]} : vector<64x128xf32> to vector<8x128xf32>
    %135 = arith.addf %133, %134 : vector<8x128xf32>
    %136 = vector.extract_strided_slice %135 {offsets = [0, 0], sizes = [8, 32], strides = [1, 1]} : vector<8x128xf32> to vector<8x32xf32>
    %137 = arith.negf %136 : vector<8x32xf32>
    %138 = math.exp %137 : vector<8x32xf32>
    %cst_35 = arith.constant 1.000000e+00 : f32
    %139 = vector.broadcast %cst_35 : f32 to vector<8x32xf32>
    %140 = arith.addf %139, %138 : vector<8x32xf32>
    %141 = arith.divf %139, %140 : vector<8x32xf32>
    %142 = vector.extract_strided_slice %135 {offsets = [0, 32], sizes = [8, 32], strides = [1, 1]} : vector<8x128xf32> to vector<8x32xf32>
    %143 = arith.negf %142 : vector<8x32xf32>
    %144 = math.exp %143 : vector<8x32xf32>
    %cst_36 = arith.constant 1.000000e+00 : f32
    %145 = vector.broadcast %cst_36 : f32 to vector<8x32xf32>
    %146 = arith.addf %145, %144 : vector<8x32xf32>
    %147 = arith.divf %145, %146 : vector<8x32xf32>
    %148 = vector.extract_strided_slice %135 {offsets = [0, 64], sizes = [8, 32], strides = [1, 1]} : vector<8x128xf32> to vector<8x32xf32>
    %149 = math.tanh %148 : vector<8x32xf32>
    %150 = vector.extract_strided_slice %135 {offsets = [0, 96], sizes = [8, 32], strides = [1, 1]} : vector<8x128xf32> to vector<8x32xf32>
    %151 = arith.negf %150 : vector<8x32xf32>
    %152 = math.exp %151 : vector<8x32xf32>
    %cst_37 = arith.constant 1.000000e+00 : f32
    %153 = vector.broadcast %cst_37 : f32 to vector<8x32xf32>
    %154 = arith.addf %153, %152 : vector<8x32xf32>
    %155 = arith.divf %153, %154 : vector<8x32xf32>
    %156 = arith.mulf %147, %127 : vector<8x32xf32>
    %157 = arith.mulf %141, %149 : vector<8x32xf32>
    %158 = arith.addf %156, %157 : vector<8x32xf32>
    %159 = math.tanh %158 : vector<8x32xf32>
    %160 = arith.mulf %155, %159 : vector<8x32xf32>
    %cst_38 = arith.constant 0.000000e+00 : f32
    %161 = vector.broadcast %cst_38 : f32 to vector<8x32xf32>
    %162 = arith.maximumf %160, %161 : vector<8x32xf32>
    %c32 = arith.constant 32 : index
    %c0_39 = arith.constant 0 : index
    %163 = vector.load %arg8[%c32, %c0_39] : memref<64x32xf32, #tpu.memory_space<vmem>>, vector<8x32xf32>
    tpu.vector_store %arg8[%c32, %c0_39], %162 {strides = array<i32>} : memref<64x32xf32, #tpu.memory_space<vmem>>, vector<8x32xf32>,
    %cst_40 = arith.constant dense<0.000000e+00> : vector<8x128xf32>
    %164 = tpu.matmul %160, %6, %cst_40 {dimension_numbers = #tpu.dot_dimension_numbers<[1], [0], [0], [1], [0, 0, 1, 1], [], []>} : vector<8x32xf32>, vector<32x128xf32>, vector<8x128xf32> -> vector<8x128xf32>
    %165 = vector.extract_strided_slice %5 {offsets = [40, 0], sizes = [8, 128], strides = [1, 1]} : vector<64x128xf32> to vector<8x128xf32>
    %166 = arith.addf %164, %165 : vector<8x128xf32>
    %167 = vector.extract_strided_slice %166 {offsets = [0, 0], sizes = [8, 32], strides = [1, 1]} : vector<8x128xf32> to vector<8x32xf32>
    %168 = arith.negf %167 : vector<8x32xf32>
    %169 = math.exp %168 : vector<8x32xf32>
    %cst_41 = arith.constant 1.000000e+00 : f32
    %170 = vector.broadcast %cst_41 : f32 to vector<8x32xf32>
    %171 = arith.addf %170, %169 : vector<8x32xf32>
    %172 = arith.divf %170, %171 : vector<8x32xf32>
    %173 = vector.extract_strided_slice %166 {offsets = [0, 32], sizes = [8, 32], strides = [1, 1]} : vector<8x128xf32> to vector<8x32xf32>
    %174 = arith.negf %173 : vector<8x32xf32>
    %175 = math.exp %174 : vector<8x32xf32>
    %cst_42 = arith.constant 1.000000e+00 : f32
    %176 = vector.broadcast %cst_42 : f32 to vector<8x32xf32>
    %177 = arith.addf %176, %175 : vector<8x32xf32>
    %178 = arith.divf %176, %177 : vector<8x32xf32>
    %179 = vector.extract_strided_slice %166 {offsets = [0, 64], sizes = [8, 32], strides = [1, 1]} : vector<8x128xf32> to vector<8x32xf32>
    %180 = math.tanh %179 : vector<8x32xf32>
    %181 = vector.extract_strided_slice %166 {offsets = [0, 96], sizes = [8, 32], strides = [1, 1]} : vector<8x128xf32> to vector<8x32xf32>
    %182 = arith.negf %181 : vector<8x32xf32>
    %183 = math.exp %182 : vector<8x32xf32>
    %cst_43 = arith.constant 1.000000e+00 : f32
    %184 = vector.broadcast %cst_43 : f32 to vector<8x32xf32>
    %185 = arith.addf %184, %183 : vector<8x32xf32>
    %186 = arith.divf %184, %185 : vector<8x32xf32>
    %187 = arith.mulf %178, %158 : vector<8x32xf32>
    %188 = arith.mulf %172, %180 : vector<8x32xf32>
    %189 = arith.addf %187, %188 : vector<8x32xf32>
    %190 = math.tanh %189 : vector<8x32xf32>
    %191 = arith.mulf %186, %190 : vector<8x32xf32>
    %cst_44 = arith.constant 0.000000e+00 : f32
    %192 = vector.broadcast %cst_44 : f32 to vector<8x32xf32>
    %193 = arith.maximumf %191, %192 : vector<8x32xf32>
    %c40 = arith.constant 40 : index
    %c0_45 = arith.constant 0 : index
    %194 = vector.load %arg8[%c40, %c0_45] : memref<64x32xf32, #tpu.memory_space<vmem>>, vector<8x32xf32>
    tpu.vector_store %arg8[%c40, %c0_45], %193 {strides = array<i32>} : memref<64x32xf32, #tpu.memory_space<vmem>>, vector<8x32xf32>,
    %cst_46 = arith.constant dense<0.000000e+00> : vector<8x128xf32>
    %195 = tpu.matmul %191, %6, %cst_46 {dimension_numbers = #tpu.dot_dimension_numbers<[1], [0], [0], [1], [0, 0, 1, 1], [], []>} : vector<8x32xf32>, vector<32x128xf32>, vector<8x128xf32> -> vector<8x128xf32>
    %196 = vector.extract_strided_slice %5 {offsets = [48, 0], sizes = [8, 128], strides = [1, 1]} : vector<64x128xf32> to vector<8x128xf32>
    %197 = arith.addf %195, %196 : vector<8x128xf32>
    %198 = vector.extract_strided_slice %197 {offsets = [0, 0], sizes = [8, 32], strides = [1, 1]} : vector<8x128xf32> to vector<8x32xf32>
    %199 = arith.negf %198 : vector<8x32xf32>
    %200 = math.exp %199 : vector<8x32xf32>
    %cst_47 = arith.constant 1.000000e+00 : f32
    %201 = vector.broadcast %cst_47 : f32 to vector<8x32xf32>
    %202 = arith.addf %201, %200 : vector<8x32xf32>
    %203 = arith.divf %201, %202 : vector<8x32xf32>
    %204 = vector.extract_strided_slice %197 {offsets = [0, 32], sizes = [8, 32], strides = [1, 1]} : vector<8x128xf32> to vector<8x32xf32>
    %205 = arith.negf %204 : vector<8x32xf32>
    %206 = math.exp %205 : vector<8x32xf32>
    %cst_48 = arith.constant 1.000000e+00 : f32
    %207 = vector.broadcast %cst_48 : f32 to vector<8x32xf32>
    %208 = arith.addf %207, %206 : vector<8x32xf32>
    %209 = arith.divf %207, %208 : vector<8x32xf32>
    %210 = vector.extract_strided_slice %197 {offsets = [0, 64], sizes = [8, 32], strides = [1, 1]} : vector<8x128xf32> to vector<8x32xf32>
    %211 = math.tanh %210 : vector<8x32xf32>
    %212 = vector.extract_strided_slice %197 {offsets = [0, 96], sizes = [8, 32], strides = [1, 1]} : vector<8x128xf32> to vector<8x32xf32>
    %213 = arith.negf %212 : vector<8x32xf32>
    %214 = math.exp %213 : vector<8x32xf32>
    %cst_49 = arith.constant 1.000000e+00 : f32
    %215 = vector.broadcast %cst_49 : f32 to vector<8x32xf32>
    %216 = arith.addf %215, %214 : vector<8x32xf32>
    %217 = arith.divf %215, %216 : vector<8x32xf32>
    %218 = arith.mulf %209, %189 : vector<8x32xf32>
    %219 = arith.mulf %203, %211 : vector<8x32xf32>
    %220 = arith.addf %218, %219 : vector<8x32xf32>
    %221 = math.tanh %220 : vector<8x32xf32>
    %222 = arith.mulf %217, %221 : vector<8x32xf32>
    %cst_50 = arith.constant 0.000000e+00 : f32
    %223 = vector.broadcast %cst_50 : f32 to vector<8x32xf32>
    %224 = arith.maximumf %222, %223 : vector<8x32xf32>
    %c48 = arith.constant 48 : index
    %c0_51 = arith.constant 0 : index
    %225 = vector.load %arg8[%c48, %c0_51] : memref<64x32xf32, #tpu.memory_space<vmem>>, vector<8x32xf32>
    tpu.vector_store %arg8[%c48, %c0_51], %224 {strides = array<i32>} : memref<64x32xf32, #tpu.memory_space<vmem>>, vector<8x32xf32>,
    %cst_52 = arith.constant dense<0.000000e+00> : vector<8x128xf32>
    %226 = tpu.matmul %222, %6, %cst_52 {dimension_numbers = #tpu.dot_dimension_numbers<[1], [0], [0], [1], [0, 0, 1, 1], [], []>} : vector<8x32xf32>, vector<32x128xf32>, vector<8x128xf32> -> vector<8x128xf32>
    %227 = vector.extract_strided_slice %5 {offsets = [56, 0], sizes = [8, 128], strides = [1, 1]} : vector<64x128xf32> to vector<8x128xf32>
    %228 = arith.addf %226, %227 : vector<8x128xf32>
    %229 = vector.extract_strided_slice %228 {offsets = [0, 0], sizes = [8, 32], strides = [1, 1]} : vector<8x128xf32> to vector<8x32xf32>
    %230 = arith.negf %229 : vector<8x32xf32>
    %231 = math.exp %230 : vector<8x32xf32>
    %cst_53 = arith.constant 1.000000e+00 : f32
    %232 = vector.broadcast %cst_53 : f32 to vector<8x32xf32>
    %233 = arith.addf %232, %231 : vector<8x32xf32>
    %234 = arith.divf %232, %233 : vector<8x32xf32>
    %235 = vector.extract_strided_slice %228 {offsets = [0, 32], sizes = [8, 32], strides = [1, 1]} : vector<8x128xf32> to vector<8x32xf32>
    %236 = arith.negf %235 : vector<8x32xf32>
    %237 = math.exp %236 : vector<8x32xf32>
    %cst_54 = arith.constant 1.000000e+00 : f32
    %238 = vector.broadcast %cst_54 : f32 to vector<8x32xf32>
    %239 = arith.addf %238, %237 : vector<8x32xf32>
    %240 = arith.divf %238, %239 : vector<8x32xf32>
    %241 = vector.extract_strided_slice %228 {offsets = [0, 64], sizes = [8, 32], strides = [1, 1]} : vector<8x128xf32> to vector<8x32xf32>
    %242 = math.tanh %241 : vector<8x32xf32>
    %243 = vector.extract_strided_slice %228 {offsets = [0, 96], sizes = [8, 32], strides = [1, 1]} : vector<8x128xf32> to vector<8x32xf32>
    %244 = arith.negf %243 : vector<8x32xf32>
    %245 = math.exp %244 : vector<8x32xf32>
    %cst_55 = arith.constant 1.000000e+00 : f32
    %246 = vector.broadcast %cst_55 : f32 to vector<8x32xf32>
    %247 = arith.addf %246, %245 : vector<8x32xf32>
    %248 = arith.divf %246, %247 : vector<8x32xf32>
    %249 = arith.mulf %240, %220 : vector<8x32xf32>
    %250 = arith.mulf %234, %242 : vector<8x32xf32>
    %251 = arith.addf %249, %250 : vector<8x32xf32>
    %252 = math.tanh %251 : vector<8x32xf32>
    %253 = arith.mulf %248, %252 : vector<8x32xf32>
    %cst_56 = arith.constant 0.000000e+00 : f32
    %254 = vector.broadcast %cst_56 : f32 to vector<8x32xf32>
    %255 = arith.maximumf %253, %254 : vector<8x32xf32>
    %c56 = arith.constant 56 : index
    %c0_57 = arith.constant 0 : index
    %256 = vector.load %arg8[%c56, %c0_57] : memref<64x32xf32, #tpu.memory_space<vmem>>, vector<8x32xf32>
    tpu.vector_store %arg8[%c56, %c0_57], %255 {strides = array<i32>} : memref<64x32xf32, #tpu.memory_space<vmem>>, vector<8x32xf32>,
    %c0_58 = arith.constant 0 : index
    %c0_59 = arith.constant 0 : index
    %257 = vector.load %arg8[%c0_58, %c0_59] : memref<64x32xf32, #tpu.memory_space<vmem>>, vector<64x32xf32>
    %c0_60 = arith.constant 0 : index
    %c0_61 = arith.constant 0 : index
    %258 = vector.load %arg5[%c0_60, %c0_61] : memref<32x128xf32, #tpu.memory_space<vmem>>, vector<32x128xf32>
    %cst_62 = arith.constant dense<0.000000e+00> : vector<64x128xf32>
    %259 = tpu.matmul %257, %258, %cst_62 {dimension_numbers = #tpu.dot_dimension_numbers<[1], [0], [0], [1], [0, 0, 1, 1], [], []>} : vector<64x32xf32>, vector<32x128xf32>, vector<64x128xf32> -> vector<64x128xf32>
    %c0_63 = arith.constant 0 : index
    %c0_64 = arith.constant 0 : index
    %260 = vector.load %arg6[%c0_63, %c0_64] : memref<1x128xf32, #tpu.memory_space<vmem>>, vector<1x128xf32>
    %261 = vector.broadcast %260 : vector<1x128xf32> to vector<64x128xf32>
    %262 = arith.addf %259, %261 : vector<64x128xf32>
    %cst_65 = arith.constant dense<0xFF800000> : vector<64xf32>
    %263 = vector.multi_reduction <maximumf>, %262, %cst_65 [1] : vector<64x128xf32> to vector<64xf32>
    %264 = vector.shape_cast %263 : vector<64xf32> to vector<64x1xf32>
    %265 = vector.broadcast %264 : vector<64x1xf32> to vector<64x128xf32>
    %266 = arith.subf %262, %265 : vector<64x128xf32>
    %267 = math.exp %266 : vector<64x128xf32>
    %cst_66 = arith.constant dense<0.000000e+00> : vector<64xf32>
    %268 = vector.multi_reduction <add>, %267, %cst_66 [1] : vector<64x128xf32> to vector<64xf32>
    %269 = vector.shape_cast %268 : vector<64xf32> to vector<64x1xf32>
    %270 = math.log %269 : vector<64x1xf32>
    %271 = arith.addf %264, %270 : vector<64x1xf32>
    %272 = vector.broadcast %271 : vector<64x1xf32> to vector<64x128xf32>
    %273 = arith.subf %262, %272 : vector<64x128xf32>
    %c0_67 = arith.constant 0 : index
    %c0_68 = arith.constant 0 : index
    %274 = vector.load %arg7[%c0_67, %c0_68] : memref<64x128xf32, #tpu.memory_space<vmem>>, vector<64x128xf32>
    tpu.vector_store %arg7[%c0_67, %c0_68], %273 {strides = array<i32>} : memref<64x128xf32, #tpu.memory_space<vmem>>, vector<64x128xf32>,
    return
  }
  func.func @transform_0(%arg0: i32) -> (i32, i32) {
    %c0_i32 = arith.constant 0 : i32
    %c0_i32_0 = arith.constant 0 : i32
    %c0_i32_1 = arith.constant 0 : i32
    return %c0_i32, %c0_i32_0 : i32, i32
  }
  func.func @transform_1(%arg0: i32) -> (i32, i32) {
    %c0_i32 = arith.constant 0 : i32
    %c0_i32_0 = arith.constant 0 : i32
    %c0_i32_1 = arith.constant 0 : i32
    return %c0_i32, %c0_i32_0 : i32, i32
  }
  func.func @transform_2(%arg0: i32) -> (i32, i32) {
    %c0_i32 = arith.constant 0 : i32
    %c0_i32_0 = arith.constant 0 : i32
    %c0_i32_1 = arith.constant 0 : i32
    return %c0_i32, %c0_i32_0 : i32, i32
  }
  func.func @transform_3(%arg0: i32) -> (i32, i32) {
    %c0_i32 = arith.constant 0 : i32
    %c0_i32_0 = arith.constant 0 : i32
    %c0_i32_1 = arith.constant 0 : i32
    return %c0_i32, %c0_i32_0 : i32, i32
  }
  func.func @transform_4(%arg0: i32) -> (i32, i32) {
    %c0_i32 = arith.constant 0 : i32
    %c0_i32_0 = arith.constant 0 : i32
    %c0_i32_1 = arith.constant 0 : i32
    return %c0_i32, %c0_i32_0 : i32, i32
  }
  func.func @transform_5(%arg0: i32) -> (i32, i32) {
    %c0_i32 = arith.constant 0 : i32
    %c0_i32_0 = arith.constant 0 : i32
    %c0_i32_1 = arith.constant 0 : i32
    return %c0_i32, %c0_i32_0 : i32, i32
  }
  func.func @transform_6(%arg0: i32) -> (i32, i32) {
    %c0_i32 = arith.constant 0 : i32
    %c0_i32_0 = arith.constant 0 : i32
    %c0_i32_1 = arith.constant 0 : i32
    return %c0_i32, %c0_i32_0 : i32, i32
  }
}

</mosaic_0001>

<llo_original>
// kernel: lstm_tagger_forward.1
$region0: #{lstm_tagger_forward.1}
  #allocation0 [shape = 'u32[]', space=smem, size = 0x4, offset = 0x4, fixed_abs, tag = 'smem constant byte address 0x4 - core index']
  #allocation1 [shape = 'u32[144,128]{1,0:T(1,128)}', space=vmem, size = 0x12000, scoped, tag = 'internal scratch']
  #allocation2 [shape = 'f32[64,32]{1,0:T(8,128)}', space=vmem, size = 0x8000, scoped, tag = 'scratch operand']
  %s0 = inlined_call_operand.vmem [shape: f32[64,16], index: 0, kind: input, shape index: {}]
  %s1 = inlined_call_operand.vmem [shape: f32[16,128], index: 1, kind: input, shape index: {}]
  %s2 = inlined_call_operand.vmem [shape: f32[32,128], index: 2, kind: input, shape index: {}]
  %s3 = inlined_call_operand.vmem [shape: f32[1,128], index: 3, kind: input, shape index: {}]
  %s4 = inlined_call_operand.vmem [shape: f32[32,128], index: 4, kind: input, shape index: {}]
  %s5 = inlined_call_operand.vmem [shape: f32[1,128], index: 5, kind: input, shape index: {}]
  %s6 = inlined_call_operand.vmem [shape: f32[64,128], index: 6, kind: output, shape index: {}]
  %s7 = sld [smem:[#allocation0]]
  $region34: #{lstm_tagger_forward.1} parent=0
    _
  %s9 = ssub.s32 1, %s7
  %s10 = scalar_select 0, %s9, %s7
  // Predicated region
  $region2: #{lstm_tagger_forward.1} parent=0 // pred_check
    _
  $region3: #{lstm_tagger_forward.1} parent=0 // pred_check_branch
    %12 = sbr.rel (0) target = $region5
  $region4: #{lstm_tagger_forward.1} parent=0 // pred_region
    _
  $region5: #{lstm_tagger_forward.1} parent=0 // pred_fallthru
    _
  // Predicated region
  $region6: #{lstm_tagger_forward.1} parent=0 // pred_check
    _
  $region7: #{lstm_tagger_forward.1} parent=0 // pred_check_branch
    %14 = sbr.rel (0) target = $region9
  $region8: #{lstm_tagger_forward.1} parent=0 // pred_region
    _
  $region9: #{lstm_tagger_forward.1} parent=0 // pred_fallthru
    _
  // Predicated region
  $region10: #{lstm_tagger_forward.1} parent=0 // pred_check
    _
  $region11: #{lstm_tagger_forward.1} parent=0 // pred_check_branch
    %16 = sbr.rel (0) target = $region13
  $region12: #{lstm_tagger_forward.1} parent=0 // pred_region
    _
  $region13: #{lstm_tagger_forward.1} parent=0 // pred_fallthru
    _
  // Predicated region
  $region14: #{lstm_tagger_forward.1} parent=0 // pred_check
    _
  $region15: #{lstm_tagger_forward.1} parent=0 // pred_check_branch
    %18 = sbr.rel (0) target = $region17
  $region16: #{lstm_tagger_forward.1} parent=0 // pred_region
    _
  $region17: #{lstm_tagger_forward.1} parent=0 // pred_fallthru
    _
  // Predicated region
  $region18: #{lstm_tagger_forward.1} parent=0 // pred_check
    _
  $region19: #{lstm_tagger_forward.1} parent=0 // pred_check_branch
    %20 = sbr.rel (0) target = $region21
  $region20: #{lstm_tagger_forward.1} parent=0 // pred_region
    _
  $region21: #{lstm_tagger_forward.1} parent=0 // pred_fallthru
    _
  // Predicated region
  $region22: #{lstm_tagger_forward.1} parent=0 // pred_check
    _
  $region23: #{lstm_tagger_forward.1} parent=0 // pred_check_branch
    %22 = sbr.rel (0) target = $region25
  $region24: #{lstm_tagger_forward.1} parent=0 // pred_region
    _
  $region25: #{lstm_tagger_forward.1} parent=0 // pred_fallthru
    _
  %v23 = vld [vmem:[%s0] sm:$0xff]
  %v24 = vld [vmem:[%s0 + $0x8] sm:$0xff]
  %v25 = vld [vmem:[%s0 + $0x10] sm:$0xff]
  %v26 = vld [vmem:[%s0 + $0x18] sm:$0xff]
  %v27 = vld [vmem:[%s0 + $0x20] sm:$0xff]
  %v28 = vld [vmem:[%s0 + $0x28] sm:$0xff]
  %v29 = vld [vmem:[%s0 + $0x30] sm:$0xff]
  %v30 = vld [vmem:[%s0 + $0x38] sm:$0xff]
  %v31 = vld [vmem:[%s1] sm:$0xff]
  %v32 = vld [vmem:[%s1 + $0x8] sm:$0xff]
  %v33 = vld [vmem:[%s3] sm:$0x1]
  %v35 = vlaneseq
  %v36 = vshrl.u32 %v35, 7
  %v37 = vsub.s32 0, %v36
  %v38 = vrot.slane %v33, %v37
  %vm40 = vcmask 130048
  %v42 = vsel %vm40, %v23, 0
  %v45 = vsel %vm40, %v24, 0
  %v48 = vsel %vm40, %v25, 0
  %v51 = vsel %vm40, %v26, 0
  %v54 = vsel %vm40, %v27, 0
  %v57 = vsel %vm40, %v28, 0
  %v60 = vsel %vm40, %v29, 0
  %v63 = vsel %vm40, %v30, 0
  %65 = vmatprep.subr.mxu0 0.0
  %66 = vmatpush1.msra.mxu0 %v31
  %67 = vmatprep.subr.mxu0 0.0
  %68 = vmatpush1.msra.mxu0 %v32
  %69 = vmatprep.subr.mxu0 0.0
  %70 = vmatpush1.msra.mxu0 0.0
  %71 = vmatprep.subr.mxu0 0.0
  %72 = vmatpush1.msra.mxu0 0.0
  %73 = vmatprep.subr.mxu0 0.0
  %74 = vmatpush1.msra.mxu0 0.0
  %75 = vmatprep.subr.mxu0 0.0
  %76 = vmatpush1.msra.mxu0 0.0
  %77 = vmatprep.subr.mxu0 0.0
  %78 = vmatpush1.msra.mxu0 0.0
  %79 = vmatprep.subr.mxu0 0.0
  %80 = vmatpush1.msra.mxu0 0.0
  %81 = vmatprep.subr.mxu0 0.0
  %82 = vmatpush1.msra.mxu0 0.0
  %83 = vmatprep.subr.mxu0 0.0
  %84 = vmatpush1.msra.mxu0 0.0
  %85 = vmatprep.subr.mxu0 0.0
  %86 = vmatpush1.msra.mxu0 0.0
  %87 = vmatprep.subr.mxu0 0.0
  %88 = vmatpush1.msra.mxu0 0.0
  %89 = vmatprep.subr.mxu0 0.0
  %90 = vmatpush1.msra.mxu0 0.0
  %91 = vmatprep.subr.mxu0 0.0
  %92 = vmatpush1.msra.mxu0 0.0
  %93 = vmatprep.subr.mxu0 0.0
  %94 = vmatpush1.msra.mxu0 0.0
  %95 = vmatprep.subr.mxu0 0.0
  %96 = vmatpush1.msra.mxu0 0.0
  %97 = vmatprep.subr.mxu0 0.0
  %98 = vmatpush1.msra.mxu0 0.0
  %99 = vmatprep.subr.mxu0 0.0
  %100 = vmatpush1.msra.mxu0 0.0
  %101 = vmatprep.subr.mxu0 0.0
  %102 = vmatpush1.msra.mxu0 0.0
  %103 = vmatprep.subr.mxu0 0.0
  %104 = vmatpush1.msra.mxu0 0.0
  %105 = vmatprep.subr.mxu0 0.0
  %106 = vmatpush1.msra.mxu0 0.0
  %107 = vmatprep.subr.mxu0 0.0
  %108 = vmatpush1.msra.mxu0 0.0
  %109 = vmatprep.subr.mxu0 0.0
  %110 = vmatpush1.msra.mxu0 0.0
  %111 = vmatprep.subr.mxu0 0.0
  %112 = vmatpush1.msra.mxu0 0.0
  %113 = vmatprep.subr.mxu0 0.0
  %114 = vmatpush1.msra.mxu0 0.0
  %115 = vmatprep.subr.mxu0 0.0
  %116 = vmatpush1.msra.mxu0 0.0
  %117 = vmatprep.subr.mxu0 0.0
  %118 = vmatpush1.msra.mxu0 0.0
  %119 = vmatprep.subr.mxu0 0.0
  %120 = vmatpush1.msra.mxu0 0.0
  %121 = vmatprep.subr.mxu0 0.0
  %122 = vmatpush1.msra.mxu0 0.0
  %123 = vmatprep.subr.mxu0 0.0
  %124 = vmatpush1.msra.mxu0 0.0
  %125 = vmatprep.subr.mxu0 0.0
  %126 = vmatpush1.msra.mxu0 0.0
  %127 = vmatprep.subr.mxu0 0.0
  %128 = vmatpush1.msra.mxu0 0.0
  %129 = vmatprep.mubr.f32.mxu0 0.0
  %130 = vmatmul.mubr.f32.gmra.mrb[0].mxu0 %v42
  %v131 = vpop.f32.mrb[0].mxu0
  %v132 = vadd.f32 %v38, %v131
  %v133 = vpop.f32.mrb[0].mxu0
  %134 = vmatprep.mubr.f32.mxu0 0.0
  %135 = vmatmul.mubr.f32.gmra.mrb[0].mxu0 %v45
  %v136 = vpop.f32.mrb[0].mxu0
  %v137 = vadd.f32 %v38, %v136
  %v138 = vpop.f32.mrb[0].mxu0
  %139 = vmatprep.mubr.f32.mxu0 0.0
  %140 = vmatmul.mubr.f32.gmra.mrb[0].mxu0 %v48
  %v141 = vpop.f32.mrb[0].mxu0
  %v142 = vadd.f32 %v38, %v141
  %v143 = vpop.f32.mrb[0].mxu0
  %144 = vmatprep.mubr.f32.mxu0 0.0
  %145 = vmatmul.mubr.f32.gmra.mrb[0].mxu0 %v51
  %v146 = vpop.f32.mrb[0].mxu0
  %v147 = vadd.f32 %v38, %v146
  %v148 = vpop.f32.mrb[0].mxu0
  %149 = vmatprep.mubr.f32.mxu0 0.0
  %150 = vmatmul.mubr.f32.gmra.mrb[0].mxu0 %v54
  %v151 = vpop.f32.mrb[0].mxu0
  %v152 = vadd.f32 %v38, %v151
  %v153 = vpop.f32.mrb[0].mxu0
  %154 = vmatprep.mubr.f32.mxu0 0.0
  %155 = vmatmul.mubr.f32.gmra.mrb[0].mxu0 %v57
  %v156 = vpop.f32.mrb[0].mxu0
  %v157 = vadd.f32 %v38, %v156
  %v158 = vpop.f32.mrb[0].mxu0
  %159 = vmatprep.mubr.f32.mxu0 0.0
  %160 = vmatmul.mubr.f32.gmra.mrb[0].mxu0 %v60
  %v161 = vpop.f32.mrb[0].mxu0
  %v162 = vadd.f32 %v38, %v161
  %v163 = vpop.f32.mrb[0].mxu0
  %164 = vmatprep.mubr.f32.mxu0 0.0
  %165 = vmatmul.mubr.f32.gmra.mrb[0].mxu0 %v63
  %v166 = vpop.f32.mrb[0].mxu0
  %v167 = vadd.f32 %v38, %v166
  %v168 = vpop.f32.mrb[0].mxu0
  %169 = vdwg.mxu0
  %v170 = vld [vmem:[%s2] sm:$0xff]
  %v171 = vld [vmem:[%s2 + $0x8] sm:$0xff]
  %v172 = vld [vmem:[%s2 + $0x10] sm:$0xff]
  %v173 = vld [vmem:[%s2 + $0x18] sm:$0xff]
  %vm174 = vcmask 261120
  %v176 = vsel %vm174, 0.0, 0
  %178 = vmatprep.subr.mxu0 0.0
  %179 = vmatpush1.msra.mxu0 %v170
  %180 = vmatprep.subr.mxu0 0.0
  %181 = vmatpush1.msra.mxu0 %v171
  %182 = vmatprep.subr.mxu0 0.0
  %183 = vmatpush1.msra.mxu0 %v172
  %184 = vmatprep.subr.mxu0 0.0
  %185 = vmatpush1.msra.mxu0 %v173
  %186 = vmatprep.subr.mxu0 0.0
  %187 = vmatpush1.msra.mxu0 0.0
  %188 = vmatprep.subr.mxu0 0.0
  %189 = vmatpush1.msra.mxu0 0.0
  %190 = vmatprep.subr.mxu0 0.0
  %191 = vmatpush1.msra.mxu0 0.0
  %192 = vmatprep.subr.mxu0 0.0
  %193 = vmatpush1.msra.mxu0 0.0
  %194 = vmatprep.subr.mxu0 0.0
  %195 = vmatpush1.msra.mxu0 0.0
  %196 = vmatprep.subr.mxu0 0.0
  %197 = vmatpush1.msra.mxu0 0.0
  %198 = vmatprep.subr.mxu0 0.0
  %199 = vmatpush1.msra.mxu0 0.0
  %200 = vmatprep.subr.mxu0 0.0
  %201 = vmatpush1.msra.mxu0 0.0
  %202 = vmatprep.subr.mxu0 0.0
  %203 = vmatpush1.msra.mxu0 0.0
  %204 = vmatprep.subr.mxu0 0.0
  %205 = vmatpush1.msra.mxu0 0.0
  %206 = vmatprep.subr.mxu0 0.0
  %207 = vmatpush1.msra.mxu0 0.0
  %208 = vmatprep.subr.mxu0 0.0
  %209 = vmatpush1.msra.mxu0 0.0
  %210 = vmatprep.subr.mxu0 0.0
  %211 = vmatpush1.msra.mxu0 0.0
  %212 = vmatprep.subr.mxu0 0.0
  %213 = vmatpush1.msra.mxu0 0.0
  %214 = vmatprep.subr.mxu0 0.0
  %215 = vmatpush1.msra.mxu0 0.0
  %216 = vmatprep.subr.mxu0 0.0
  %217 = vmatpush1.msra.mxu0 0.0
  %218 = vmatprep.subr.mxu0 0.0
  %219 = vmatpush1.msra.mxu0 0.0
  %220 = vmatprep.subr.mxu0 0.0
  %221 = vmatpush1.msra.mxu0 0.0
  %222 = vmatprep.subr.mxu0 0.0
  %223 = vmatpush1.msra.mxu0 0.0
  %224 = vmatprep.subr.mxu0 0.0
  %225 = vmatpush1.msra.mxu0 0.0
  %226 = vmatprep.subr.mxu0 0.0
  %227 = vmatpush1.msra.mxu0 0.0
  %228 = vmatprep.subr.mxu0 0.0
  %229 = vmatpush1.msra.mxu0 0.0
  %230 = vmatprep.subr.mxu0 0.0
  %231 = vmatpush1.msra.mxu0 0.0
  %232 = vmatprep.subr.mxu0 0.0
  %233 = vmatpush1.msra.mxu0 0.0
  %234 = vmatprep.subr.mxu0 0.0
  %235 = vmatpush1.msra.mxu0 0.0
  %236 = vmatprep.subr.mxu0 0.0
  %237 = vmatpush1.msra.mxu0 0.0
  %238 = vmatprep.subr.mxu0 0.0
  %239 = vmatpush1.msra.mxu0 0.0
  %240 = vmatprep.subr.mxu0 0.0
  %241 = vmatpush1.msra.mxu0 0.0
  %242 = vmatprep.mubr.f32.mxu0 0.0
  %243 = vmatmul.mubr.f32.gmra.mrb[0].mxu0 %v176
  %v244 = vpop.f32.mrb[0].mxu0
  %v245 = vadd.f32 %v132, %v244
  %v246 = vpop.f32.mrb[0].mxu0
  %247 = vdwg.mxu0
  %v248 = vxor.u32 %v245, 2147483648
  %v249 = vmul.f32 %v248, 1.442695
  %v250 = vpow.pop %v249
  %v251 = vadd.f32 %v250, 1.0
  %v252 = vrcp.pop %v251
  %v253 = vmul.f32 1.0, %v252
  %v254 = vtanh.pop %v245
  %v255 = vmul.f32 %v253, 0.0
  %257 = vrot.lane.b32.xlu0 %v254, 64
  %v258 = vpop.permute.xlu0 %257
  %v260 = vmul.f32 %v253, %v258
  %262 = vrot.lane.b32.xlu0 %v260, 32
  %v263 = vpop.permute.xlu0 %262
  %v265 = vadd.f32 %v255, %v263
  %v266 = vtanh.pop %v265
  %268 = vrot.lane.b32.xlu0 %v266, 64
  %v269 = vpop.permute.xlu0 %268
  %v271 = vmul.f32 %v253, %v269
  %v272 = vmax.f32 %v271, 0.0
  %274 = vrot.lane.b32.xlu0 %v272, 32
  %v275 = vpop.permute.xlu0 %274
  %277 = vst.msk [vmem:[#allocation2] sm:$0xff] %vm174, %v275
  %279 = vrot.lane.b32.xlu0 %v271, 32
  %v280 = vpop.permute.xlu0 %279
  %v281 = vsel %vm174, %v280, 0
  %283 = vmatprep.subr.mxu0 0.0
  %284 = vmatpush1.msra.mxu0 %v170
  %285 = vmatprep.subr.mxu0 0.0
  %286 = vmatpush1.msra.mxu0 %v171
  %287 = vmatprep.subr.mxu0 0.0
  %288 = vmatpush1.msra.mxu0 %v172
  %289 = vmatprep.subr.mxu0 0.0
  %290 = vmatpush1.msra.mxu0 %v173
  %291 = vmatprep.subr.mxu0 0.0
  %292 = vmatpush1.msra.mxu0 0.0
  %293 = vmatprep.subr.mxu0 0.0
  %294 = vmatpush1.msra.mxu0 0.0
  %295 = vmatprep.subr.mxu0 0.0
  %296 = vmatpush1.msra.mxu0 0.0
  %297 = vmatprep.subr.mxu0 0.0
  %298 = vmatpush1.msra.mxu0 0.0
  %299 = vmatprep.subr.mxu0 0.0
  %300 = vmatpush1.msra.mxu0 0.0
  %301 = vmatprep.subr.mxu0 0.0
  %302 = vmatpush1.msra.mxu0 0.0
  %303 = vmatprep.subr.mxu0 0.0
  %304 = vmatpush1.msra.mxu0 0.0
  %305 = vmatprep.subr.mxu0 0.0
  %306 = vmatpush1.msra.mxu0 0.0
  %307 = vmatprep.subr.mxu0 0.0
  %308 = vmatpush1.msra.mxu0 0.0
  %309 = vmatprep.subr.mxu0 0.0
  %310 = vmatpush1.msra.mxu0 0.0
  %311 = vmatprep.subr.mxu0 0.0
  %312 = vmatpush1.msra.mxu0 0.0
  %313 = vmatprep.subr.mxu0 0.0
  %314 = vmatpush1.msra.mxu0 0.0
  %315 = vmatprep.subr.mxu0 0.0
  %316 = vmatpush1.msra.mxu0 0.0
  %317 = vmatprep.subr.mxu0 0.0
  %318 = vmatpush1.msra.mxu0 0.0
  %319 = vmatprep.subr.mxu0 0.0
  %320 = vmatpush1.msra.mxu0 0.0
  %321 = vmatprep.subr.mxu0 0.0
  %322 = vmatpush1.msra.mxu0 0.0
  %323 = vmatprep.subr.mxu0 0.0
  %324 = vmatpush1.msra.mxu0 0.0
  %325 = vmatprep.subr.mxu0 0.0
  %326 = vmatpush1.msra.mxu0 0.0
  %327 = vmatprep.subr.mxu0 0.0
  %328 = vmatpush1.msra.mxu0 0.0
  %329 = vmatprep.subr.mxu0 0.0
  %330 = vmatpush1.msra.mxu0 0.0
  %331 = vmatprep.subr.mxu0 0.0
  %332 = vmatpush1.msra.mxu0 0.0
  %333 = vmatprep.subr.mxu0 0.0
  %334 = vmatpush1.msra.mxu0 0.0
  %335 = vmatprep.subr.mxu0 0.0
  %336 = vmatpush1.msra.mxu0 0.0
  %337 = vmatprep.subr.mxu0 0.0
  %338 = vmatpush1.msra.mxu0 0.0
  %339 = vmatprep.subr.mxu0 0.0
  %340 = vmatpush1.msra.mxu0 0.0
  %341 = vmatprep.subr.mxu0 0.0
  %342 = vmatpush1.msra.mxu0 0.0
  %343 = vmatprep.subr.mxu0 0.0
  %344 = vmatpush1.msra.mxu0 0.0
  %345 = vmatprep.subr.mxu0 0.0
  %346 = vmatpush1.msra.mxu0 0.0
  %347 = vmatprep.mubr.f32.mxu0 0.0
  %348 = vmatmul.mubr.f32.gmra.mrb[0].mxu0 %v281
  %v349 = vpop.f32.mrb[0].mxu0
  %v350 = vadd.f32 %v137, %v349
  %v351 = vpop.f32.mrb[0].mxu0
  %352 = vdwg.mxu0
  %v353 = vxor.u32 %v350, 2147483648
  %v354 = vmul.f32 %v353, 1.442695
  %v355 = vpow.pop %v354
  %v356 = vadd.f32 %v355, 1.0
  %v357 = vrcp.pop %v356
  %v358 = vmul.f32 1.0, %v357
  %v359 = vtanh.pop %v350
  %v360 = vmul.f32 %v358, %v265
  %362 = vrot.lane.b32.xlu0 %v359, 64
  %v363 = vpop.permute.xlu0 %362
  %v365 = vmul.f32 %v358, %v363
  %367 = vrot.lane.b32.xlu0 %v365, 32
  %v368 = vpop.permute.xlu0 %367
  %v370 = vadd.f32 %v360, %v368
  %v371 = vtanh.pop %v370
  %373 = vrot.lane.b32.xlu0 %v371, 64
  %v374 = vpop.permute.xlu0 %373
  %v376 = vmul.f32 %v358, %v374
  %v377 = vmax.f32 %v376, 0.0
  %379 = vrot.lane.b32.xlu0 %v377, 32
  %v380 = vpop.permute.xlu0 %379
  %382 = vst.msk [vmem:[#allocation2 + $0x8] sm:$0xff] %vm174, %v380
  %384 = vrot.lane.b32.xlu0 %v376, 32
  %v385 = vpop.permute.xlu0 %384
  %v386 = vsel %vm174, %v385, 0
  %388 = vmatprep.subr.mxu0 0.0
  %389 = vmatpush1.msra.mxu0 %v170
  %390 = vmatprep.subr.mxu0 0.0
  %391 = vmatpush1.msra.mxu0 %v171
  %392 = vmatprep.subr.mxu0 0.0
  %393 = vmatpush1.msra.mxu0 %v172
  %394 = vmatprep.subr.mxu0 0.0
  %395 = vmatpush1.msra.mxu0 %v173
  %396 = vmatprep.subr.mxu0 0.0
  %397 = vmatpush1.msra.mxu0 0.0
  %398 = vmatprep.subr.mxu0 0.0
  %399 = vmatpush1.msra.mxu0 0.0
  %400 = vmatprep.subr.mxu0 0.0
  %401 = vmatpush1.msra.mxu0 0.0
  %402 = vmatprep.subr.mxu0 0.0
  %403 = vmatpush1.msra.mxu0 0.0
  %404 = vmatprep.subr.mxu0 0.0
  %405 = vmatpush1.msra.mxu0 0.0
  %406 = vmatprep.subr.mxu0 0.0
  %407 = vmatpush1.msra.mxu0 0.0
  %408 = vmatprep.subr.mxu0 0.0
  %409 = vmatpush1.msra.mxu0 0.0
  %410 = vmatprep.subr.mxu0 0.0
  %411 = vmatpush1.msra.mxu0 0.0
  %412 = vmatprep.subr.mxu0 0.0
  %413 = vmatpush1.msra.mxu0 0.0
  %414 = vmatprep.subr.mxu0 0.0
  %415 = vmatpush1.msra.mxu0 0.0
  %416 = vmatprep.subr.mxu0 0.0
  %417 = vmatpush1.msra.mxu0 0.0
  %418 = vmatprep.subr.mxu0 0.0
  %419 = vmatpush1.msra.mxu0 0.0
  %420 = vmatprep.subr.mxu0 0.0
  %421 = vmatpush1.msra.mxu0 0.0
  %422 = vmatprep.subr.mxu0 0.0
  %423 = vmatpush1.msra.mxu0 0.0
  %424 = vmatprep.subr.mxu0 0.0
  %425 = vmatpush1.msra.mxu0 0.0
  %426 = vmatprep.subr.mxu0 0.0
  %427 = vmatpush1.msra.mxu0 0.0
  %428 = vmatprep.subr.mxu0 0.0
  %429 = vmatpush1.msra.mxu0 0.0
  %430 = vmatprep.subr.mxu0 0.0
  %431 = vmatpush1.msra.mxu0 0.0
  %432 = vmatprep.subr.mxu0 0.0
  %433 = vmatpush1.msra.mxu0 0.0
  %434 = vmatprep.subr.mxu0 0.0
  %435 = vmatpush1.msra.mxu0 0.0
  %436 = vmatprep.subr.mxu0 0.0
  %437 = vmatpush1.msra.mxu0 0.0
  %438 = vmatprep.subr.mxu0 0.0
  %439 = vmatpush1.msra.mxu0 0.0
  %440 = vmatprep.subr.mxu0 0.0
  %441 = vmatpush1.msra.mxu0 0.0
  %442 = vmatprep.subr.mxu0 0.0
  %443 = vmatpush1.msra.mxu0 0.0
  %444 = vmatprep.subr.mxu0 0.0
  %445 = vmatpush1.msra.mxu0 0.0
  %446 = vmatprep.subr.mxu0 0.0
  %447 = vmatpush1.msra.mxu0 0.0
  %448 = vmatprep.subr.mxu0 0.0
  %449 = vmatpush1.msra.mxu0 0.0
  %450 = vmatprep.subr.mxu0 0.0
  %451 = vmatpush1.msra.mxu0 0.0
  %452 = vmatprep.mubr.f32.mxu0 0.0
  %453 = vmatmul.mubr.f32.gmra.mrb[0].mxu0 %v386
  %v454 = vpop.f32.mrb[0].mxu0
  %v455 = vadd.f32 %v142, %v454
  %v456 = vpop.f32.mrb[0].mxu0
  %457 = vdwg.mxu0
  %v458 = vxor.u32 %v455, 2147483648
  %v459 = vmul.f32 %v458, 1.442695
  %v460 = vpow.pop %v459
  %v461 = vadd.f32 %v460, 1.0
  %v462 = vrcp.pop %v461
  %v463 = vmul.f32 1.0, %v462
  %v464 = vtanh.pop %v455
  %v465 = vmul.f32 %v463, %v370
  %467 = vrot.lane.b32.xlu0 %v464, 64
  %v468 = vpop.permute.xlu0 %467
  %v470 = vmul.f32 %v463, %v468
  %472 = vrot.lane.b32.xlu0 %v470, 32
  %v473 = vpop.permute.xlu0 %472
  %v475 = vadd.f32 %v465, %v473
  %v476 = vtanh.pop %v475
  %478 = vrot.lane.b32.xlu0 %v476, 64
  %v479 = vpop.permute.xlu0 %478
  %v481 = vmul.f32 %v463, %v479
  %v482 = vmax.f32 %v481, 0.0
  %484 = vrot.lane.b32.xlu0 %v482, 32
  %v485 = vpop.permute.xlu0 %484
  %487 = vst.msk [vmem:[#allocation2 + $0x10] sm:$0xff] %vm174, %v485
  %489 = vrot.lane.b32.xlu0 %v481, 32
  %v490 = vpop.permute.xlu0 %489
  %v491 = vsel %vm174, %v490, 0
  %493 = vmatprep.subr.mxu0 0.0
  %494 = vmatpush1.msra.mxu0 %v170
  %495 = vmatprep.subr.mxu0 0.0
  %496 = vmatpush1.msra.mxu0 %v171
  %497 = vmatprep.subr.mxu0 0.0
  %498 = vmatpush1.msra.mxu0 %v172
  %499 = vmatprep.subr.mxu0 0.0
  %500 = vmatpush1.msra.mxu0 %v173
  %501 = vmatprep.subr.mxu0 0.0
  %502 = vmatpush1.msra.mxu0 0.0
  %503 = vmatprep.subr.mxu0 0.0
  %504 = vmatpush1.msra.mxu0 0.0
  %505 = vmatprep.subr.mxu0 0.0
  %506 = vmatpush1.msra.mxu0 0.0
  %507 = vmatprep.subr.mxu0 0.0
  %508 = vmatpush1.msra.mxu0 0.0
  %509 = vmatprep.subr.mxu0 0.0
  %510 = vmatpush1.msra.mxu0 0.0
  %511 = vmatprep.subr.mxu0 0.0
  %512 = vmatpush1.msra.mxu0 0.0
  %513 = vmatprep.subr.mxu0 0.0
  %514 = vmatpush1.msra.mxu0 0.0
  %515 = vmatprep.subr.mxu0 0.0
  %516 = vmatpush1.msra.mxu0 0.0
  %517 = vmatprep.subr.mxu0 0.0
  %518 = vmatpush1.msra.mxu0 0.0
  %519 = vmatprep.subr.mxu0 0.0
  %520 = vmatpush1.msra.mxu0 0.0
  %521 = vmatprep.subr.mxu0 0.0
  %522 = vmatpush1.msra.mxu0 0.0
  %523 = vmatprep.subr.mxu0 0.0
  %524 = vmatpush1.msra.mxu0 0.0
  %525 = vmatprep.subr.mxu0 0.0
  %526 = vmatpush1.msra.mxu0 0.0
  %527 = vmatprep.subr.mxu0 0.0
  %528 = vmatpush1.msra.mxu0 0.0
  %529 = vmatprep.subr.mxu0 0.0
  %530 = vmatpush1.msra.mxu0 0.0
  %531 = vmatprep.subr.mxu0 0.0
  %532 = vmatpush1.msra.mxu0 0.0
  %533 = vmatprep.subr.mxu0 0.0
  %534 = vmatpush1.msra.mxu0 0.0
  %535 = vmatprep.subr.mxu0 0.0
  %536 = vmatpush1.msra.mxu0 0.0
  %537 = vmatprep.subr.mxu0 0.0
  %538 = vmatpush1.msra.mxu0 0.0
  %539 = vmatprep.subr.mxu0 0.0
  %540 = vmatpush1.msra.mxu0 0.0
  %541 = vmatprep.subr.mxu0 0.0
  %542 = vmatpush1.msra.mxu0 0.0
  %543 = vmatprep.subr.mxu0 0.0
  %544 = vmatpush1.msra.mxu0 0.0
  %545 = vmatprep.subr.mxu0 0.0
  %546 = vmatpush1.msra.mxu0 0.0
  %547 = vmatprep.subr.mxu0 0.0
  %548 = vmatpush1.msra.mxu0 0.0
  %549 = vmatprep.subr.mxu0 0.0
  %550 = vmatpush1.msra.mxu0 0.0
  %551 = vmatprep.subr.mxu0 0.0
  %552 = vmatpush1.msra.mxu0 0.0
  %553 = vmatprep.subr.mxu0 0.0
  %554 = vmatpush1.msra.mxu0 0.0
  %555 = vmatprep.subr.mxu0 0.0
  %556 = vmatpush1.msra.mxu0 0.0
  %557 = vmatprep.mubr.f32.mxu0 0.0
  %558 = vmatmul.mubr.f32.gmra.mrb[0].mxu0 %v491
  %v559 = vpop.f32.mrb[0].mxu0
  %v560 = vadd.f32 %v147, %v559
  %v561 = vpop.f32.mrb[0].mxu0
  %562 = vdwg.mxu0
  %v563 = vxor.u32 %v560, 2147483648
  %v564 = vmul.f32 %v563, 1.442695
  %v565 = vpow.pop %v564
  %v566 = vadd.f32 %v565, 1.0
  %v567 = vrcp.pop %v566
  %v568 = vmul.f32 1.0, %v567
  %v569 = vtanh.pop %v560
  %v570 = vmul.f32 %v568, %v475
  %572 = vrot.lane.b32.xlu0 %v569, 64
  %v573 = vpop.permute.xlu0 %572
  %v575 = vmul.f32 %v568, %v573
  %577 = vrot.lane.b32.xlu0 %v575, 32
  %v578 = vpop.permute.xlu0 %577
  %v580 = vadd.f32 %v570, %v578
  %v581 = vtanh.pop %v580
  %583 = vrot.lane.b32.xlu0 %v581, 64
  %v584 = vpop.permute.xlu0 %583
  %v586 = vmul.f32 %v568, %v584
  %v587 = vmax.f32 %v586, 0.0
  %589 = vrot.lane.b32.xlu0 %v587, 32
  %v590 = vpop.permute.xlu0 %589
  %592 = vst.msk [vmem:[#allocation2 + $0x18] sm:$0xff] %vm174, %v590
  %594 = vrot.lane.b32.xlu0 %v586, 32
  %v595 = vpop.permute.xlu0 %594
  %v596 = vsel %vm174, %v595, 0
  %598 = vmatprep.subr.mxu0 0.0
  %599 = vmatpush1.msra.mxu0 %v170
  %600 = vmatprep.subr.mxu0 0.0
  %601 = vmatpush1.msra.mxu0 %v171
  %602 = vmatprep.subr.mxu0 0.0
  %603 = vmatpush1.msra.mxu0 %v172
  %604 = vmatprep.subr.mxu0 0.0
  %605 = vmatpush1.msra.mxu0 %v173
  %606 = vmatprep.subr.mxu0 0.0
  %607 = vmatpush1.msra.mxu0 0.0
  %608 = vmatprep.subr.mxu0 0.0
  %609 = vmatpush1.msra.mxu0 0.0
  %610 = vmatprep.subr.mxu0 0.0
  %611 = vmatpush1.msra.mxu0 0.0
  %612 = vmatprep.subr.mxu0 0.0
  %613 = vmatpush1.msra.mxu0 0.0
  %614 = vmatprep.subr.mxu0 0.0
  %615 = vmatpush1.msra.mxu0 0.0
  %616 = vmatprep.subr.mxu0 0.0
  %617 = vmatpush1.msra.mxu0 0.0
  %618 = vmatprep.subr.mxu0 0.0
  %619 = vmatpush1.msra.mxu0 0.0
  %620 = vmatprep.subr.mxu0 0.0
  %621 = vmatpush1.msra.mxu0 0.0
  %622 = vmatprep.subr.mxu0 0.0
  %623 = vmatpush1.msra.mxu0 0.0
  %624 = vmatprep.subr.mxu0 0.0
  %625 = vmatpush1.msra.mxu0 0.0
  %626 = vmatprep.subr.mxu0 0.0
  %627 = vmatpush1.msra.mxu0 0.0
  %628 = vmatprep.subr.mxu0 0.0
  %629 = vmatpush1.msra.mxu0 0.0
  %630 = vmatprep.subr.mxu0 0.0
  %631 = vmatpush1.msra.mxu0 0.0
  %632 = vmatprep.subr.mxu0 0.0
  %633 = vmatpush1.msra.mxu0 0.0
  %634 = vmatprep.subr.mxu0 0.0
  %635 = vmatpush1.msra.mxu0 0.0
  %636 = vmatprep.subr.mxu0 0.0
  %637 = vmatpush1.msra.mxu0 0.0
  %638 = vmatprep.subr.mxu0 0.0
  %639 = vmatpush1.msra.mxu0 0.0
  %640 = vmatprep.subr.mxu0 0.0
  %641 = vmatpush1.msra.mxu0 0.0
  %642 = vmatprep.subr.mxu0 0.0
  %643 = vmatpush1.msra.mxu0 0.0
  %644 = vmatprep.subr.mxu0 0.0
  %645 = vmatpush1.msra.mxu0 0.0
  %646 = vmatprep.subr.mxu0 0.0
  %647 = vmatpush1.msra.mxu0 0.0
  %648 = vmatprep.subr.mxu0 0.0
  %649 = vmatpush1.msra.mxu0 0.0
  %650 = vmatprep.subr.mxu0 0.0
  %651 = vmatpush1.msra.mxu0 0.0
  %652 = vmatprep.subr.mxu0 0.0
  %653 = vmatpush1.msra.mxu0 0.0
  %654 = vmatprep.subr.mxu0 0.0
  %655 = vmatpush1.msra.mxu0 0.0
  %656 = vmatprep.subr.mxu0 0.0
  %657 = vmatpush1.msra.mxu0 0.0
  %658 = vmatprep.subr.mxu0 0.0
  %659 = vmatpush1.msra.mxu0 0.0
  %660 = vmatprep.subr.mxu0 0.0
  %661 = vmatpush1.msra.mxu0 0.0
  %662 = vmatprep.mubr.f32.mxu0 0.0
  %663 = vmatmul.mubr.f32.gmra.mrb[0].mxu0 %v596
  %v664 = vpop.f32.mrb[0].mxu0
  %v665 = vadd.f32 %v152, %v664
  %v666 = vpop.f32.mrb[0].mxu0
  %667 = vdwg.mxu0
  %v668 = vxor.u32 %v665, 2147483648
  %v669 = vmul.f32 %v668, 1.442695
  %v670 = vpow.pop %v669
  %v671 = vadd.f32 %v670, 1.0
  %v672 = vrcp.pop %v671
  %v673 = vmul.f32 1.0, %v672
  %v674 = vtanh.pop %v665
  %v675 = vmul.f32 %v673, %v580
  %677 = vrot.lane.b32.xlu0 %v674, 64
  %v678 = vpop.permute.xlu0 %677
  %v680 = vmul.f32 %v673, %v678
  %682 = vrot.lane.b32.xlu0 %v680, 32
  %v683 = vpop.permute.xlu0 %682
  %v685 = vadd.f32 %v675, %v683
  %v686 = vtanh.pop %v685
  %688 = vrot.lane.b32.xlu0 %v686, 64
  %v689 = vpop.permute.xlu0 %688
  %v691 = vmul.f32 %v673, %v689
  %v692 = vmax.f32 %v691, 0.0
  %694 = vrot.lane.b32.xlu0 %v692, 32
  %v695 = vpop.permute.xlu0 %694
  %697 = vst.msk [vmem:[#allocation2 + $0x20] sm:$0xff] %vm174, %v695
  %699 = vrot.lane.b32.xlu0 %v691, 32
  %v700 = vpop.permute.xlu0 %699
  %v701 = vsel %vm174, %v700, 0
  %703 = vmatprep.subr.mxu0 0.0
  %704 = vmatpush1.msra.mxu0 %v170
  %705 = vmatprep.subr.mxu0 0.0
  %706 = vmatpush1.msra.mxu0 %v171
  %707 = vmatprep.subr.mxu0 0.0
  %708 = vmatpush1.msra.mxu0 %v172
  %709 = vmatprep.subr.mxu0 0.0
  %710 = vmatpush1.msra.mxu0 %v173
  %711 = vmatprep.subr.mxu0 0.0
  %712 = vmatpush1.msra.mxu0 0.0
  %713 = vmatprep.subr.mxu0 0.0
  %714 = vmatpush1.msra.mxu0 0.0
  %715 = vmatprep.subr.mxu0 0.0
  %716 = vmatpush1.msra.mxu0 0.0
  %717 = vmatprep.subr.mxu0 0.0
  %718 = vmatpush1.msra.mxu0 0.0
  %719 = vmatprep.subr.mxu0 0.0
  %720 = vmatpush1.msra.mxu0 0.0
  %721 = vmatprep.subr.mxu0 0.0
  %722 = vmatpush1.msra.mxu0 0.0
  %723 = vmatprep.subr.mxu0 0.0
  %724 = vmatpush1.msra.mxu0 0.0
  %725 = vmatprep.subr.mxu0 0.0
  %726 = vmatpush1.msra.mxu0 0.0
  %727 = vmatprep.subr.mxu0 0.0
  %728 = vmatpush1.msra.mxu0 0.0
  %729 = vmatprep.subr.mxu0 0.0
  %730 = vmatpush1.msra.mxu0 0.0
  %731 = vmatprep.subr.mxu0 0.0
  %732 = vmatpush1.msra.mxu0 0.0
  %733 = vmatprep.subr.mxu0 0.0
  %734 = vmatpush1.msra.mxu0 0.0
  %735 = vmatprep.subr.mxu0 0.0
  %736 = vmatpush1.msra.mxu0 0.0
  %737 = vmatprep.subr.mxu0 0.0
  %738 = vmatpush1.msra.mxu0 0.0
  %739 = vmatprep.subr.mxu0 0.0
  %740 = vmatpush1.msra.mxu0 0.0
  %741 = vmatprep.subr.mxu0 0.0
  %742 = vmatpush1.msra.mxu0 0.0
  %743 = vmatprep.subr.mxu0 0.0
  %744 = vmatpush1.msra.mxu0 0.0
  %745 = vmatprep.subr.mxu0 0.0
  %746 = vmatpush1.msra.mxu0 0.0
  %747 = vmatprep.subr.mxu0 0.0
  %748 = vmatpush1.msra.mxu0 0.0
  %749 = vmatprep.subr.mxu0 0.0
  %750 = vmatpush1.msra.mxu0 0.0
  %751 = vmatprep.subr.mxu0 0.0
  %752 = vmatpush1.msra.mxu0 0.0
  %753 = vmatprep.subr.mxu0 0.0
  %754 = vmatpush1.msra.mxu0 0.0
  %755 = vmatprep.subr.mxu0 0.0
  %756 = vmatpush1.msra.mxu0 0.0
  %757 = vmatprep.subr.mxu0 0.0
  %758 = vmatpush1.msra.mxu0 0.0
  %759 = vmatprep.subr.mxu0 0.0
  %760 = vmatpush1.msra.mxu0 0.0
  %761 = vmatprep.subr.mxu0 0.0
  %762 = vmatpush1.msra.mxu0 0.0
  %763 = vmatprep.subr.mxu0 0.0
  %764 = vmatpush1.msra.mxu0 0.0
  %765 = vmatprep.subr.mxu0 0.0
  %766 = vmatpush1.msra.mxu0 0.0
  %767 = vmatprep.mubr.f32.mxu0 0.0
  %768 = vmatmul.mubr.f32.gmra.mrb[0].mxu0 %v701
  %v769 = vpop.f32.mrb[0].mxu0
  %v770 = vadd.f32 %v157, %v769
  %v771 = vpop.f32.mrb[0].mxu0
  %772 = vdwg.mxu0
  %v773 = vxor.u32 %v770, 2147483648
  %v774 = vmul.f32 %v773, 1.442695
  %v775 = vpow.pop %v774
  %v776 = vadd.f32 %v775, 1.0
  %v777 = vrcp.pop %v776
  %v778 = vmul.f32 1.0, %v777
  %v779 = vtanh.pop %v770
  %v780 = vmul.f32 %v778, %v685
  %782 = vrot.lane.b32.xlu0 %v779, 64
  %v783 = vpop.permute.xlu0 %782
  %v785 = vmul.f32 %v778, %v783
  %787 = vrot.lane.b32.xlu0 %v785, 32
  %v788 = vpop.permute.xlu0 %787
  %v790 = vadd.f32 %v780, %v788
  %v791 = vtanh.pop %v790
  %793 = vrot.lane.b32.xlu0 %v791, 64
  %v794 = vpop.permute.xlu0 %793
  %v796 = vmul.f32 %v778, %v794
  %v797 = vmax.f32 %v796, 0.0
  %799 = vrot.lane.b32.xlu0 %v797, 32
  %v800 = vpop.permute.xlu0 %799
  %802 = vst.msk [vmem:[#allocation2 + $0x28] sm:$0xff] %vm174, %v800
  %804 = vrot.lane.b32.xlu0 %v796, 32
  %v805 = vpop.permute.xlu0 %804
  %v806 = vsel %vm174, %v805, 0
  %808 = vmatprep.subr.mxu0 0.0
  %809 = vmatpush1.msra.mxu0 %v170
  %810 = vmatprep.subr.mxu0 0.0
  %811 = vmatpush1.msra.mxu0 %v171
  %812 = vmatprep.subr.mxu0 0.0
  %813 = vmatpush1.msra.mxu0 %v172
  %814 = vmatprep.subr.mxu0 0.0
  %815 = vmatpush1.msra.mxu0 %v173
  %816 = vmatprep.subr.mxu0 0.0
  %817 = vmatpush1.msra.mxu0 0.0
  %818 = vmatprep.subr.mxu0 0.0
  %819 = vmatpush1.msra.mxu0 0.0
  %820 = vmatprep.subr.mxu0 0.0
  %821 = vmatpush1.msra.mxu0 0.0
  %822 = vmatprep.subr.mxu0 0.0
  %823 = vmatpush1.msra.mxu0 0.0
  %824 = vmatprep.subr.mxu0 0.0
  %825 = vmatpush1.msra.mxu0 0.0
  %826 = vmatprep.subr.mxu0 0.0
  %827 = vmatpush1.msra.mxu0 0.0
  %828 = vmatprep.subr.mxu0 0.0
  %829 = vmatpush1.msra.mxu0 0.0
  %830 = vmatprep.subr.mxu0 0.0
  %831 = vmatpush1.msra.mxu0 0.0
  %832 = vmatprep.subr.mxu0 0.0
  %833 = vmatpush1.msra.mxu0 0.0
  %834 = vmatprep.subr.mxu0 0.0
  %835 = vmatpush1.msra.mxu0 0.0
  %836 = vmatprep.subr.mxu0 0.0
  %837 = vmatpush1.msra.mxu0 0.0
  %838 = vmatprep.subr.mxu0 0.0
  %839 = vmatpush1.msra.mxu0 0.0
  %840 = vmatprep.subr.mxu0 0.0
  %841 = vmatpush1.msra.mxu0 0.0
  %842 = vmatprep.subr.mxu0 0.0
  %843 = vmatpush1.msra.mxu0 0.0
  %844 = vmatprep.subr.mxu0 0.0
  %845 = vmatpush1.msra.mxu0 0.0
  %846 = vmatprep.subr.mxu0 0.0
  %847 = vmatpush1.msra.mxu0 0.0
  %848 = vmatprep.subr.mxu0 0.0
  %849 = vmatpush1.msra.mxu0 0.0
  %850 = vmatprep.subr.mxu0 0.0
  %851 = vmatpush1.msra.mxu0 0.0
  %852 = vmatprep.subr.mxu0 0.0
  %853 = vmatpush1.msra.mxu0 0.0
  %854 = vmatprep.subr.mxu0 0.0
  %855 = vmatpush1.msra.mxu0 0.0
  %856 = vmatprep.subr.mxu0 0.0
  %857 = vmatpush1.msra.mxu0 0.0
  %858 = vmatprep.subr.mxu0 0.0
  %859 = vmatpush1.msra.mxu0 0.0
  %860 = vmatprep.subr.mxu0 0.0
  %861 = vmatpush1.msra.mxu0 0.0
  %862 = vmatprep.subr.mxu0 0.0
  %863 = vmatpush1.msra.mxu0 0.0
  %864 = vmatprep.subr.mxu0 0.0
  %865 = vmatpush1.msra.mxu0 0.0
  %866 = vmatprep.subr.mxu0 0.0
  %867 = vmatpush1.msra.mxu0 0.0
  %868 = vmatprep.subr.mxu0 0.0
  %869 = vmatpush1.msra.mxu0 0.0
  %870 = vmatprep.subr.mxu0 0.0
  %871 = vmatpush1.msra.mxu0 0.0
  %872 = vmatprep.mubr.f32.mxu0 0.0
  %873 = vmatmul.mubr.f32.gmra.mrb[0].mxu0 %v806
  %v874 = vpop.f32.mrb[0].mxu0
  %v875 = vadd.f32 %v162, %v874
  %v876 = vpop.f32.mrb[0].mxu0
  %877 = vdwg.mxu0
  %v878 = vxor.u32 %v875, 2147483648
  %v879 = vmul.f32 %v878, 1.442695
  %v880 = vpow.pop %v879
  %v881 = vadd.f32 %v880, 1.0
  %v882 = vrcp.pop %v881
  %v883 = vmul.f32 1.0, %v882
  %v884 = vtanh.pop %v875
  %v885 = vmul.f32 %v883, %v790
  %887 = vrot.lane.b32.xlu0 %v884, 64
  %v888 = vpop.permute.xlu0 %887
  %v890 = vmul.f32 %v883, %v888
  %892 = vrot.lane.b32.xlu0 %v890, 32
  %v893 = vpop.permute.xlu0 %892
  %v895 = vadd.f32 %v885, %v893
  %v896 = vtanh.pop %v895
  %898 = vrot.lane.b32.xlu0 %v896, 64
  %v899 = vpop.permute.xlu0 %898
  %v901 = vmul.f32 %v883, %v899
  %v902 = vmax.f32 %v901, 0.0
  %904 = vrot.lane.b32.xlu0 %v902, 32
  %v905 = vpop.permute.xlu0 %904
  %907 = vst.msk [vmem:[#allocation2 + $0x30] sm:$0xff] %vm174, %v905
  %909 = vrot.lane.b32.xlu0 %v901, 32
  %v910 = vpop.permute.xlu0 %909
  %v911 = vsel %vm174, %v910, 0
  %913 = vmatprep.subr.mxu0 0.0
  %914 = vmatpush1.msra.mxu0 %v170
  %915 = vmatprep.subr.mxu0 0.0
  %916 = vmatpush1.msra.mxu0 %v171
  %917 = vmatprep.subr.mxu0 0.0
  %918 = vmatpush1.msra.mxu0 %v172
  %919 = vmatprep.subr.mxu0 0.0
  %920 = vmatpush1.msra.mxu0 %v173
  %921 = vmatprep.subr.mxu0 0.0
  %922 = vmatpush1.msra.mxu0 0.0
  %923 = vmatprep.subr.mxu0 0.0
  %924 = vmatpush1.msra.mxu0 0.0
  %925 = vmatprep.subr.mxu0 0.0
  %926 = vmatpush1.msra.mxu0 0.0
  %927 = vmatprep.subr.mxu0 0.0
  %928 = vmatpush1.msra.mxu0 0.0
  %929 = vmatprep.subr.mxu0 0.0
  %930 = vmatpush1.msra.mxu0 0.0
  %931 = vmatprep.subr.mxu0 0.0
  %932 = vmatpush1.msra.mxu0 0.0
  %933 = vmatprep.subr.mxu0 0.0
  %934 = vmatpush1.msra.mxu0 0.0
  %935 = vmatprep.subr.mxu0 0.0
  %936 = vmatpush1.msra.mxu0 0.0
  %937 = vmatprep.subr.mxu0 0.0
  %938 = vmatpush1.msra.mxu0 0.0
  %939 = vmatprep.subr.mxu0 0.0
  %940 = vmatpush1.msra.mxu0 0.0
  %941 = vmatprep.subr.mxu0 0.0
  %942 = vmatpush1.msra.mxu0 0.0
  %943 = vmatprep.subr.mxu0 0.0
  %944 = vmatpush1.msra.mxu0 0.0
  %945 = vmatprep.subr.mxu0 0.0
  %946 = vmatpush1.msra.mxu0 0.0
  %947 = vmatprep.subr.mxu0 0.0
  %948 = vmatpush1.msra.mxu0 0.0
  %949 = vmatprep.subr.mxu0 0.0
  %950 = vmatpush1.msra.mxu0 0.0
  %951 = vmatprep.subr.mxu0 0.0
  %952 = vmatpush1.msra.mxu0 0.0
  %953 = vmatprep.subr.mxu0 0.0
  %954 = vmatpush1.msra.mxu0 0.0
  %955 = vmatprep.subr.mxu0 0.0
  %956 = vmatpush1.msra.mxu0 0.0
  %957 = vmatprep.subr.mxu0 0.0
  %958 = vmatpush1.msra.mxu0 0.0
  %959 = vmatprep.subr.mxu0 0.0
  %960 = vmatpush1.msra.mxu0 0.0
  %961 = vmatprep.subr.mxu0 0.0
  %962 = vmatpush1.msra.mxu0 0.0
  %963 = vmatprep.subr.mxu0 0.0
  %964 = vmatpush1.msra.mxu0 0.0
  %965 = vmatprep.subr.mxu0 0.0
  %966 = vmatpush1.msra.mxu0 0.0
  %967 = vmatprep.subr.mxu0 0.0
  %968 = vmatpush1.msra.mxu0 0.0
  %969 = vmatprep.subr.mxu0 0.0
  %970 = vmatpush1.msra.mxu0 0.0
  %971 = vmatprep.subr.mxu0 0.0
  %972 = vmatpush1.msra.mxu0 0.0
  %973 = vmatprep.subr.mxu0 0.0
  %974 = vmatpush1.msra.mxu0 0.0
  %975 = vmatprep.subr.mxu0 0.0
  %976 = vmatpush1.msra.mxu0 0.0
  %977 = vmatprep.mubr.f32.mxu0 0.0
  %978 = vmatmul.mubr.f32.gmra.mrb[0].mxu0 %v911
  %v979 = vpop.f32.mrb[0].mxu0
  %v980 = vadd.f32 %v167, %v979
  %v981 = vpop.f32.mrb[0].mxu0
  %982 = vdwg.mxu0
  %v983 = vxor.u32 %v980, 2147483648
  %v984 = vmul.f32 %v983, 1.442695
  %v985 = vpow.pop %v984
  %v986 = vadd.f32 %v985, 1.0
  %v987 = vrcp.pop %v986
  %v988 = vmul.f32 1.0, %v987
  %v989 = vtanh.pop %v980
  %v990 = vmul.f32 %v988, %v895
  %992 = vrot.lane.b32.xlu0 %v989, 64
  %v993 = vpop.permute.xlu0 %992
  %v995 = vmul.f32 %v988, %v993
  %997 = vrot.lane.b32.xlu0 %v995, 32
  %v998 = vpop.permute.xlu0 %997
  %v1000 = vadd.f32 %v990, %v998
  %v1001 = vtanh.pop %v1000
  %1003 = vrot.lane.b32.xlu0 %v1001, 64
  %v1004 = vpop.permute.xlu0 %1003
  %v1006 = vmul.f32 %v988, %v1004
  %v1007 = vmax.f32 %v1006, 0.0
  %1009 = vrot.lane.b32.xlu0 %v1007, 32
  %v1010 = vpop.permute.xlu0 %1009
  %1012 = vst.msk [vmem:[#allocation2 + $0x38] sm:$0xff] %vm174, %v1010
  %v1013 = vld [vmem:[#allocation2] sm:$0xff]
  %v1014 = vld [vmem:[#allocation2 + $0x8] sm:$0xff]
  %v1015 = vld [vmem:[#allocation2 + $0x10] sm:$0xff]
  %v1016 = vld [vmem:[#allocation2 + $0x18] sm:$0xff]
  %v1017 = vld [vmem:[#allocation2 + $0x20] sm:$0xff]
  %v1018 = vld [vmem:[#allocation2 + $0x28] sm:$0xff]
  %v1019 = vld [vmem:[#allocation2 + $0x30] sm:$0xff]
  %v1020 = vld [vmem:[#allocation2 + $0x38] sm:$0xff]
  %v1021 = vld [vmem:[%s4] sm:$0xff]
  %v1022 = vld [vmem:[%s4 + $0x8] sm:$0xff]
  %v1023 = vld [vmem:[%s4 + $0x10] sm:$0xff]
  %v1024 = vld [vmem:[%s4 + $0x18] sm:$0xff]
  %v1025 = vld [vmem:[%s5] sm:$0x1]
  %v1027 = vlaneseq
  %v1028 = vshrl.u32 %v1027, 7
  %v1029 = vsub.s32 0, %v1028
  %v1030 = vrot.slane %v1025, %v1029
  %v1033 = vsel %vm174, %v1013, 0
  %v1036 = vsel %vm174, %v1014, 0
  %v1039 = vsel %vm174, %v1015, 0
  %v1042 = vsel %vm174, %v1016, 0
  %v1045 = vsel %vm174, %v1017, 0
  %v1048 = vsel %vm174, %v1018, 0
  %v1051 = vsel %vm174, %v1019, 0
  %v1054 = vsel %vm174, %v1020, 0
  %1056 = vmatprep.subr.mxu0 0.0
  %1057 = vmatpush1.msra.mxu0 %v1021
  %1058 = vmatprep.subr.mxu0 0.0
  %1059 = vmatpush1.msra.mxu0 %v1022
  %1060 = vmatprep.subr.mxu0 0.0
  %1061 = vmatpush1.msra.mxu0 %v1023
  %1062 = vmatprep.subr.mxu0 0.0
  %1063 = vmatpush1.msra.mxu0 %v1024
  %1064 = vmatprep.subr.mxu0 0.0
  %1065 = vmatpush1.msra.mxu0 0.0
  %1066 = vmatprep.subr.mxu0 0.0
  %1067 = vmatpush1.msra.mxu0 0.0
  %1068 = vmatprep.subr.mxu0 0.0
  %1069 = vmatpush1.msra.mxu0 0.0
  %1070 = vmatprep.subr.mxu0 0.0
  %1071 = vmatpush1.msra.mxu0 0.0
  %1072 = vmatprep.subr.mxu0 0.0
  %1073 = vmatpush1.msra.mxu0 0.0
  %1074 = vmatprep.subr.mxu0 0.0
  %1075 = vmatpush1.msra.mxu0 0.0
  %1076 = vmatprep.subr.mxu0 0.0
  %1077 = vmatpush1.msra.mxu0 0.0
  %1078 = vmatprep.subr.mxu0 0.0
  %1079 = vmatpush1.msra.mxu0 0.0
  %1080 = vmatprep.subr.mxu0 0.0
  %1081 = vmatpush1.msra.mxu0 0.0
  %1082 = vmatprep.subr.mxu0 0.0
  %1083 = vmatpush1.msra.mxu0 0.0
  %1084 = vmatprep.subr.mxu0 0.0
  %1085 = vmatpush1.msra.mxu0 0.0
  %1086 = vmatprep.subr.mxu0 0.0
  %1087 = vmatpush1.msra.mxu0 0.0
  %1088 = vmatprep.subr.mxu0 0.0
  %1089 = vmatpush1.msra.mxu0 0.0
  %1090 = vmatprep.subr.mxu0 0.0
  %1091 = vmatpush1.msra.mxu0 0.0
  %1092 = vmatprep.subr.mxu0 0.0
  %1093 = vmatpush1.msra.mxu0 0.0
  %1094 = vmatprep.subr.mxu0 0.0
  %1095 = vmatpush1.msra.mxu0 0.0
  %1096 = vmatprep.subr.mxu0 0.0
  %1097 = vmatpush1.msra.mxu0 0.0
  %1098 = vmatprep.subr.mxu0 0.0
  %1099 = vmatpush1.msra.mxu0 0.0
  %1100 = vmatprep.subr.mxu0 0.0
  %1101 = vmatpush1.msra.mxu0 0.0
  %1102 = vmatprep.subr.mxu0 0.0
  %1103 = vmatpush1.msra.mxu0 0.0
  %1104 = vmatprep.subr.mxu0 0.0
  %1105 = vmatpush1.msra.mxu0 0.0
  %1106 = vmatprep.subr.mxu0 0.0
  %1107 = vmatpush1.msra.mxu0 0.0
  %1108 = vmatprep.subr.mxu0 0.0
  %1109 = vmatpush1.msra.mxu0 0.0
  %1110 = vmatprep.subr.mxu0 0.0
  %1111 = vmatpush1.msra.mxu0 0.0
  %1112 = vmatprep.subr.mxu0 0.0
  %1113 = vmatpush1.msra.mxu0 0.0
  %1114 = vmatprep.subr.mxu0 0.0
  %1115 = vmatpush1.msra.mxu0 0.0
  %1116 = vmatprep.subr.mxu0 0.0
  %1117 = vmatpush1.msra.mxu0 0.0
  %1118 = vmatprep.subr.mxu0 0.0
  %1119 = vmatpush1.msra.mxu0 0.0
  %1120 = vmatprep.mubr.f32.mxu0 0.0
  %1121 = vmatmul.mubr.f32.gmra.mrb[0].mxu0 %v1033
  %v1122 = vpop.f32.mrb[0].mxu0
  %v1123 = vadd.f32 %v1030, %v1122
  %v1124 = vpop.f32.mrb[0].mxu0
  %1125 = vmatprep.mubr.f32.mxu0 0.0
  %1126 = vmatmul.mubr.f32.gmra.mrb[0].mxu0 %v1036
  %v1127 = vpop.f32.mrb[0].mxu0
  %v1128 = vadd.f32 %v1030, %v1127
  %v1129 = vpop.f32.mrb[0].mxu0
  %1130 = vmatprep.mubr.f32.mxu0 0.0
  %1131 = vmatmul.mubr.f32.gmra.mrb[0].mxu0 %v1039
  %v1132 = vpop.f32.mrb[0].mxu0
  %v1133 = vadd.f32 %v1030, %v1132
  %v1134 = vpop.f32.mrb[0].mxu0
  %1135 = vmatprep.mubr.f32.mxu0 0.0
  %1136 = vmatmul.mubr.f32.gmra.mrb[0].mxu0 %v1042
  %v1137 = vpop.f32.mrb[0].mxu0
  %v1138 = vadd.f32 %v1030, %v1137
  %v1139 = vpop.f32.mrb[0].mxu0
  %1140 = vmatprep.mubr.f32.mxu0 0.0
  %1141 = vmatmul.mubr.f32.gmra.mrb[0].mxu0 %v1045
  %v1142 = vpop.f32.mrb[0].mxu0
  %v1143 = vadd.f32 %v1030, %v1142
  %v1144 = vpop.f32.mrb[0].mxu0
  %1145 = vmatprep.mubr.f32.mxu0 0.0
  %1146 = vmatmul.mubr.f32.gmra.mrb[0].mxu0 %v1048
  %v1147 = vpop.f32.mrb[0].mxu0
  %v1148 = vadd.f32 %v1030, %v1147
  %v1149 = vpop.f32.mrb[0].mxu0
  %1150 = vmatprep.mubr.f32.mxu0 0.0
  %1151 = vmatmul.mubr.f32.gmra.mrb[0].mxu0 %v1051
  %v1152 = vpop.f32.mrb[0].mxu0
  %v1153 = vadd.f32 %v1030, %v1152
  %v1154 = vpop.f32.mrb[0].mxu0
  %1155 = vmatprep.mubr.f32.mxu0 0.0
  %1156 = vmatmul.mubr.f32.gmra.mrb[0].mxu0 %v1054
  %v1157 = vpop.f32.mrb[0].mxu0
  %v1158 = vadd.f32 %v1030, %v1157
  %v1159 = vpop.f32.mrb[0].mxu0
  %1160 = vdwg.mxu0
  %1161 = vmax.xlane.f32.xlu0 %v1123
  %v1162 = vpop.xlane.xlu0 %1161
  %1163 = vmax.xlane.f32.xlu0 %v1128
  %v1164 = vpop.xlane.xlu0 %1163
  %1165 = vmax.xlane.f32.xlu0 %v1133
  %v1166 = vpop.xlane.xlu0 %1165
  %1167 = vmax.xlane.f32.xlu0 %v1138
  %v1168 = vpop.xlane.xlu0 %1167
  %1169 = vmax.xlane.f32.xlu0 %v1143
  %v1170 = vpop.xlane.xlu0 %1169
  %1171 = vmax.xlane.f32.xlu0 %v1148
  %v1172 = vpop.xlane.xlu0 %1171
  %1173 = vmax.xlane.f32.xlu0 %v1153
  %v1174 = vpop.xlane.xlu0 %1173
  %1175 = vmax.xlane.f32.xlu0 %v1158
  %v1176 = vpop.xlane.xlu0 %1175
  %v1177 = vsub.f32 %v1123, %v1162
  %v1178 = vsub.f32 %v1128, %v1164
  %v1179 = vsub.f32 %v1133, %v1166
  %v1180 = vsub.f32 %v1138, %v1168
  %v1181 = vsub.f32 %v1143, %v1170
  %v1182 = vsub.f32 %v1148, %v1172
  %v1183 = vsub.f32 %v1153, %v1174
  %v1184 = vsub.f32 %v1158, %v1176
  %v1185 = vmul.f32 %v1177, 1.442695
  %v1186 = vpow.pop %v1185
  %v1187 = vmul.f32 %v1178, 1.442695
  %v1188 = vpow.pop %v1187
  %v1189 = vmul.f32 %v1179, 1.442695
  %v1190 = vpow.pop %v1189
  %v1191 = vmul.f32 %v1180, 1.442695
  %v1192 = vpow.pop %v1191
  %v1193 = vmul.f32 %v1181, 1.442695
  %v1194 = vpow.pop %v1193
  %v1195 = vmul.f32 %v1182, 1.442695
  %v1196 = vpow.pop %v1195
  %v1197 = vmul.f32 %v1183, 1.442695
  %v1198 = vpow.pop %v1197
  %v1199 = vmul.f32 %v1184, 1.442695
  %v1200 = vpow.pop %v1199
  %1201 = vadd.xlane.f32.xlu0 %v1186
  %v1202 = vpop.xlane.xlu0 %1201
  %1203 = vadd.xlane.f32.xlu0 %v1188
  %v1204 = vpop.xlane.xlu0 %1203
  %1205 = vadd.xlane.f32.xlu0 %v1190
  %v1206 = vpop.xlane.xlu0 %1205
  %1207 = vadd.xlane.f32.xlu0 %v1192
  %v1208 = vpop.xlane.xlu0 %1207
  %1209 = vadd.xlane.f32.xlu0 %v1194
  %v1210 = vpop.xlane.xlu0 %1209
  %1211 = vadd.xlane.f32.xlu0 %v1196
  %v1212 = vpop.xlane.xlu0 %1211
  %1213 = vadd.xlane.f32.xlu0 %v1198
  %v1214 = vpop.xlane.xlu0 %1213
  %1215 = vadd.xlane.f32.xlu0 %v1200
  %v1216 = vpop.xlane.xlu0 %1215
  %v1217 = vlog2.pop %v1202
  %v1218 = vmul.f32 %v1217, 0.6931472
  %v1219 = vlog2.pop %v1204
  %v1220 = vmul.f32 %v1219, 0.6931472
  %v1221 = vlog2.pop %v1206
  %v1222 = vmul.f32 %v1221, 0.6931472
  %v1223 = vlog2.pop %v1208
  %v1224 = vmul.f32 %v1223, 0.6931472
  %v1225 = vlog2.pop %v1210
  %v1226 = vmul.f32 %v1225, 0.6931472
  %v1227 = vlog2.pop %v1212
  %v1228 = vmul.f32 %v1227, 0.6931472
  %v1229 = vlog2.pop %v1214
  %v1230 = vmul.f32 %v1229, 0.6931472
  %v1231 = vlog2.pop %v1216
  %v1232 = vmul.f32 %v1231, 0.6931472
  %v1233 = vadd.f32 %v1162, %v1218
  %v1234 = vadd.f32 %v1164, %v1220
  %v1235 = vadd.f32 %v1166, %v1222
  %v1236 = vadd.f32 %v1168, %v1224
  %v1237 = vadd.f32 %v1170, %v1226
  %v1238 = vadd.f32 %v1172, %v1228
  %v1239 = vadd.f32 %v1174, %v1230
  %v1240 = vadd.f32 %v1176, %v1232
  %v1241 = vsub.f32 %v1123, %v1233
  %v1242 = vsub.f32 %v1128, %v1234
  %v1243 = vsub.f32 %v1133, %v1235
  %v1244 = vsub.f32 %v1138, %v1236
  %v1245 = vsub.f32 %v1143, %v1237
  %v1246 = vsub.f32 %v1148, %v1238
  %v1247 = vsub.f32 %v1153, %v1239
  %v1248 = vsub.f32 %v1158, %v1240
  %1249 = vst [vmem:[%s6] sm:$0xff] %v1241
  %1250 = vst [vmem:[%s6 + $0x8] sm:$0xff] %v1242
  %1251 = vst [vmem:[%s6 + $0x10] sm:$0xff] %v1243
  %1252 = vst [vmem:[%s6 + $0x18] sm:$0xff] %v1244
  %1253 = vst [vmem:[%s6 + $0x20] sm:$0xff] %v1245
  %1254 = vst [vmem:[%s6 + $0x28] sm:$0xff] %v1246
  %1255 = vst [vmem:[%s6 + $0x30] sm:$0xff] %v1247
  %1256 = vst [vmem:[%s6 + $0x38] sm:$0xff] %v1248
  // Predicated region
  $region26: #{lstm_tagger_forward.1} parent=0 // pred_check
    _
  $region27: #{lstm_tagger_forward.1} parent=0 // pred_check_branch
    %1258 = sbr.rel (0) target = $region29
  $region28: #{lstm_tagger_forward.1} parent=0 // pred_region
    _
  $region29: #{lstm_tagger_forward.1} parent=0 // pred_fallthru
    _
  // Predicated region
  $region30: #{lstm_tagger_forward.1} parent=0 // pred_check
    _
  $region31: #{lstm_tagger_forward.1} parent=0 // pred_check_branch
    %1260 = sbr.rel (0) target = $region33
  $region32: #{lstm_tagger_forward.1} parent=0 // pred_region
    _
  $region33: #{lstm_tagger_forward.1} parent=0 // pred_fallthru
    _

</llo_original>
